<compile_context>
chip_gen: v7x
topology: tpu7x:2x2x1
jax: 0.10.0
libtpu: 0.0.40
codegen_flags: <defaults>
</compile_context>

<pallas_src>
import jax
import jax.numpy as jnp
from jax.experimental import pallas as pl
from jax.experimental.pallas import tpu as pltpu

_LANES = 128
_SUBLANES = 8
_TV_CAP = 2048          # vocab tile (grid reduction axis) -> bounds VMEM for large V
_TB_CAP = 256           # batch tile cap (fills v6e/v7x 256-wide MXU M dim)


def _round_up(x, m):
    return (x + m - 1) // m * m


def _make_kernel(emit_features, inv_seq_len):
    def kernel(counts_ref, table_ref, w1_ref, b1_ref, w2_ref, b2_ref, *refs):
        # counts_ref: (TB, TV)  bf16 integer bag-of-words counts (this vocab tile)
        # table_ref : (TV, E)   bf16 embedding table tile
        # w1_ref    : (E, H)    bf16 feature_extractor weight (pre-transposed)
        # b1_ref    : (1, H)    f32
        # w2_ref    : (H, CP)   bf16 classifier weight (pre-transposed, lane-padded)
        # b2_ref    : (1, CP)   f32
        # refs      : logits (TB, CP) [, features (TB, H)], pooled acc (TB, E) f32
        if emit_features:
            logits_ref, feat_ref, acc_ref = refs
        else:
            (logits_ref, acc_ref), feat_ref = refs, None

        vj = pl.program_id(1)

        @pl.when(vj == 0)
        def _init():
            acc_ref[...] = jnp.zeros_like(acc_ref)

        # Fused embedding gather + sum-pool: sum_s table[tok[b,s], :] == counts @ table.
        # bf16 x bf16 on the MXU, f32 accumulation.
        acc_ref[...] += jnp.dot(counts_ref[...], table_ref[...],
                                preferred_element_type=jnp.float32)

        @pl.when(vj == pl.num_programs(1) - 1)
        def _finalize():
            pooled = acc_ref[...] * inv_seq_len              # mean = sum / S (f32)
            h = jnp.dot(pooled.astype(jnp.bfloat16), w1_ref[...],
                        preferred_element_type=jnp.float32) + b1_ref[...]
            feat = jnp.maximum(h, 0.0)                       # ReLU
            # TODO(synk): Dropout(p=0.5) is identity in eval mode; training-mode
            # Bernoulli mask (pltpu.prng_seed / prng_random_bits) not implemented.
            logits_ref[...] = jnp.dot(feat.astype(jnp.bfloat16), w2_ref[...],
                                      preferred_element_type=jnp.float32) + b2_ref[...]
            if emit_features:
                feat_ref[...] = feat.astype(feat_ref.dtype)

    return kernel


def prepare_params(params):
    """One-time parameter prep (hoisted out of the per-call forward path).

    params: PyTorch-layout dict: 'embedding' (V,E), 'w1' (H,E), 'b1' (H,),
            'w2' (C,H), 'b2' (C,).
    """
    table = jnp.asarray(params["embedding"], jnp.float32)            # (V, E)
    V, E = table.shape
    # Vocab padding / tiling so counts and table can be gridded over V.
    Vp = _round_up(V, _LANES)
    TV = Vp if Vp <= _TV_CAP else _TV_CAP
    Vp = _round_up(V, TV)
    table_p = jnp.zeros((Vp, E), jnp.bfloat16).at[:V].set(table.astype(jnp.bfloat16))

    w1 = jnp.asarray(params["w1"], jnp.float32)                      # (H, E)
    b1 = jnp.asarray(params["b1"], jnp.float32).reshape(1, -1)       # (1, H)  f32
    w2 = jnp.asarray(params["w2"], jnp.float32)                      # (C, H)
    b2 = jnp.asarray(params["b2"], jnp.float32)                      # (C,)
    H = w1.shape[0]
    C = w2.shape[0]
    CP = _round_up(max(C, _LANES), _LANES)                           # lane-dense logits
    w1_t = w1.T.astype(jnp.bfloat16)                                 # (E, H)   bf16
    w2_t = jnp.zeros((H, CP), jnp.bfloat16).at[:, :C].set(w2.T.astype(jnp.bfloat16))
    b2_p = jnp.zeros((1, CP), jnp.float32).at[:, :C].set(b2)         # (1, CP)  f32
    return {"table": table_p, "tv": int(TV), "vocab_size": int(V),
            "w1_t": w1_t, "b1": b1, "w2_t": w2_t, "b2": b2_p, "num_classes": int(C)}


def simple_text_classifier_forward(tokens, prepared, return_features=False,
                                   features_dtype=jnp.float32, tb_cap=_TB_CAP):
    """Forward pass matching SimpleTextClassifier.forward (eval mode).

    tokens  : (B, S) int32 token ids
    prepared: output of prepare_params()
    """
    table = prepared["table"]          # (Vp, E) bf16
    w1_t = prepared["w1_t"]            # (E, H)  bf16
    b1 = prepared["b1"]                # (1, H)  f32
    w2_t = prepared["w2_t"]            # (H, CP) bf16
    b2 = prepared["b2"]                # (1, CP) f32
    C = prepared["num_classes"]
    TV = prepared["tv"]

    Vp, E = table.shape
    H = w1_t.shape[1]
    CP = w2_t.shape[1]
    B, S = tokens.shape

    # Fused gather + mean setup: integer bag-of-words counts via one-hot compare+sum
    # (no XLA scatter).  Counts are exact in bf16 for S <= 256; 1/S is applied in-kernel.
    # TODO(synk): for very large vocabularies a true token-gather path (scalar-prefetched
    # ids + row gather) would avoid the B*V counts; the dense path is kept here because
    # it is exact, MXU-friendly, and VMEM-bounded via the vocab grid axis.
    ids = jnp.asarray(tokens, jnp.int32)
    counts = (ids[:, :, None] == jnp.arange(Vp, dtype=jnp.int32)).sum(axis=1)
    counts = counts.astype(jnp.bfloat16)                             # (B, Vp)

    # Batch tiling.
    TB = min(tb_cap, _round_up(B, _SUBLANES))
    if B > _SUBLANES and _round_up(B, TB) == TB:
        # Single batch step: split it so v7x's second TensorCore gets work.
        TB = _round_up((B + 1) // 2, _SUBLANES)
    Bp = _round_up(B, TB)
    if Bp != B:
        counts = jnp.pad(counts, ((0, Bp - B), (0, 0)))
    nB, nV = Bp // TB, Vp // TV
    grid = (nB, nV)
    inv_seq_len = 1.0 / float(S)
    feat_bytes = jnp.dtype(features_dtype).itemsize

    def run(single_buffer_resident):
        def resident(shape, index_map):
            # Resident operands are fetched once -> one VMEM buffer is enough.
            if single_buffer_resident:
                return pl.BlockSpec(shape, index_map, pipeline_mode=pl.Buffered(1))
            return pl.BlockSpec(shape, index_map)

        in_specs = [
            pl.BlockSpec((TB, TV), lambda i, j: (i, j)),                 # counts
            (resident((TV, E), lambda i, j: (0, 0)) if nV == 1
             else pl.BlockSpec((TV, E), lambda i, j: (j, 0))),           # table
            resident((E, H), lambda i, j: (0, 0)),                       # w1_t
            resident((1, H), lambda i, j: (0, 0)),                       # b1
            resident((H, CP), lambda i, j: (0, 0)),                      # w2_t
            resident((1, CP), lambda i, j: (0, 0)),                      # b2
        ]
        out_shapes = [jax.ShapeDtypeStruct((Bp, CP), jnp.float32)]
        out_specs = [pl.BlockSpec((TB, CP), lambda i, j: (i, 0))]
        if return_features:
            out_shapes.append(jax.ShapeDtypeStruct((Bp, H), features_dtype))
            out_specs.append(pl.BlockSpec((TB, H), lambda i, j: (i, 0)))

        # Accurate VMEM budget: pipelined blocks x2, resident blocks x1, plus headroom.
        rbuf = 1 if single_buffer_resident else 2
        tbuf = rbuf if nV == 1 else 2
        vmem_need = (
            2 * TB * TV * 2                                  # counts (bf16, 2 bufs)
            + tbuf * TV * E * 2                              # table (bf16)
            + rbuf * (E * H * 2 + H * 4 + H * CP * 2 + CP * 4)   # weights / biases
            + 2 * TB * CP * 4                                # logits out
            + (2 * TB * H * feat_bytes if return_features else 0)
            + TB * E * 4                                     # pooled accumulator
        )
        vmem_limit = int(vmem_need) + (4 << 20)              # never capped below need

        return pl.pallas_call(
            _make_kernel(return_features, inv_seq_len),
            out_shape=tuple(out_shapes),
            grid_spec=pltpu.PrefetchScalarGridSpec(
                num_scalar_prefetch=0,
                grid=grid,
                in_specs=in_specs,
                out_specs=tuple(out_specs),
                scratch_shapes=[pltpu.VMEM((TB, E), jnp.float32)],
            ),
            compiler_params=pltpu.CompilerParams(
                dimension_semantics=("parallel", "arbitrary"),
                vmem_limit_bytes=vmem_limit,
            ),
        )(counts, table, w1_t, b1, w2_t, b2)

    try:
        outs = run(True)      # single-buffer the resident weights (halves their VMEM)
    except Exception:         # pl.Buffered(1) unsupported -> default double-buffering
        outs = run(False)

    outs = outs if isinstance(outs, (tuple, list)) else (outs,)
    logits = outs[0][:B, :C]
    if return_features:
        return logits, outs[1][:B]
    return logits


def init_params(key, vocab_size, embed_dim, hidden_dim, num_classes):
    """Deterministic parameter init (PyTorch-layout weights: (out, in))."""
    k_emb, k_w1, k_b1, k_w2, k_b2 = jax.random.split(key, 5)
    embedding = jax.random.normal(k_emb, (vocab_size, embed_dim), jnp.float32)
    lim1 = 1.0 / jnp.sqrt(embed_dim)
    w1 = jax.random.uniform(k_w1, (hidden_dim, embed_dim), jnp.float32, -lim1, lim1)
    b1 = jax.random.uniform(k_b1, (hidden_dim,), jnp.float32, -lim1, lim1)
    lim2 = 1.0 / jnp.sqrt(hidden_dim)
    w2 = jax.random.uniform(k_w2, (num_classes, hidden_dim), jnp.float32, -lim2, lim2)
    b2 = jax.random.uniform(k_b2, (num_classes,), jnp.float32, -lim2, lim2)
    return {"embedding": embedding, "w1": w1, "b1": b1, "w2": w2, "b2": b2}


if __name__ == "__main__":
    # Small shapes consistent with the module's forward:
    # tokens (B, S) int ids, vocab V, embed E, hidden H, classes C.
    B, S = 8, 16
    V, E, H, C = 512, 128, 256, 8

    key = jax.random.PRNGKey(0)
    k_params, k_tok = jax.random.split(key)
    params = init_params(k_params, V, E, H, C)
    tokens = jax.random.randint(k_tok, (B, S), 0, V, dtype=jnp.int32)

    prepared = prepare_params(params)   # one-time weight prep (hoisted)

    logits, features = simple_text_classifier_forward(
        tokens, prepared, return_features=True)
    logits_only = simple_text_classifier_forward(
        tokens, prepared, return_features=False)
    jax.block_until_ready((logits, features, logits_only))

    # Reference: identical math with the same bf16 parameter/activation rounding and
    # f32 accumulation (mirrors the MXU), computed in plain JAX.
    def f32(x):
        return x.astype(jnp.float32)

    table_r = f32(prepared["table"])[:V]                 # bf16-rounded embedding
    w1_r = f32(prepared["w1_t"])                         # (E, H)
    w2_r = f32(prepared["w2_t"])[:, :C]                  # (H, C)
    counts_r = (tokens[:, :, None] == jnp.arange(V)).sum(1).astype(jnp.float32)
    pooled_r = (counts_r @ table_r) / S
    h_r = f32(pooled_r.astype(jnp.bfloat16)) @ w1_r + params["b1"][None, :]
    feat_r = jnp.maximum(h_r, 0.0)
    logits_r = f32(feat_r.astype(jnp.bfloat16)) @ w2_r + params["b2"][None, :]

    assert logits.shape == (B, C) and features.shape == (B, H)
    assert jnp.allclose(logits, logits_r, atol=1e-2, rtol=1e-2)
    assert jnp.allclose(features, feat_r, atol=1e-2, rtol=1e-2)
    assert jnp.allclose(logits_only, logits_r, atol=1e-2, rtol=1e-2)

    print("KERNEL_OK")
</pallas_src>

<mosaic_0001>
module attributes {stable_mosaic.version = 11 : i64} {
  func.func @kernel(%arg0: i32, %arg1: i32, %arg2: memref<8x512xbf16, #tpu.memory_space<vmem>>, %arg3: memref<512x128xbf16, #tpu.memory_space<vmem>>, %arg4: memref<128x256xbf16, #tpu.memory_space<vmem>>, %arg5: memref<1x256xf32, #tpu.memory_space<vmem>>, %arg6: memref<256x128xbf16, #tpu.memory_space<vmem>>, %arg7: memref<1x128xf32, #tpu.memory_space<vmem>>, %arg8: memref<8x128xf32, #tpu.memory_space<vmem>>, %arg9: memref<8x256xf32, #tpu.memory_space<vmem>>, %arg10: memref<8x128xf32, #tpu.memory_space<vmem>>) attributes {dimension_semantics = [#tpu.dimension_semantics<parallel>, #tpu.dimension_semantics<arbitrary>], iteration_bounds = array<i64: 1, 1>, scalar_prefetch = 0 : i64, scratch_operands = 1 : i64, tpu.core_type = #tpu.core_type<tc>, window_params = [{transform_indices = @transform_0, window_bounds = array<i64: 8, 512>}, {pipeline_mode = #tpu.pipeline_mode<synchronous>, transform_indices = @transform_1, window_bounds = array<i64: 512, 128>}, {pipeline_mode = #tpu.pipeline_mode<synchronous>, transform_indices = @transform_2, window_bounds = array<i64: 128, 256>}, {pipeline_mode = #tpu.pipeline_mode<synchronous>, transform_indices = @transform_3, window_bounds = array<i64: 1, 256>}, {pipeline_mode = #tpu.pipeline_mode<synchronous>, transform_indices = @transform_4, window_bounds = array<i64: 256, 128>}, {pipeline_mode = #tpu.pipeline_mode<synchronous>, transform_indices = @transform_5, window_bounds = array<i64: 1, 128>}, {transform_indices = @transform_6, window_bounds = array<i64: 8, 128>}, {transform_indices = @transform_7, window_bounds = array<i64: 8, 256>}]} {
    %c0_i32 = arith.constant 0 : i32
    %0 = arith.cmpi eq, %arg1, %c0_i32 : i32
    %1 = arith.extui %0 : i1 to i32
    %c0_i32_0 = arith.constant 0 : i32
    %2 = arith.cmpi ne, %1, %c0_i32_0 : i32
    scf.if %2 {
      %cst_10 = arith.constant 0.000000e+00 : f32
      %12 = vector.broadcast %cst_10 : f32 to vector<8x128xf32>
      %c0_11 = arith.constant 0 : index
      %c0_12 = arith.constant 0 : index
      %13 = vector.load %arg10[%c0_11, %c0_12] : memref<8x128xf32, #tpu.memory_space<vmem>>, vector<8x128xf32>
      tpu.vector_store %arg10[%c0_11, %c0_12], %12 {strides = array<i32>} : memref<8x128xf32, #tpu.memory_space<vmem>>, vector<8x128xf32>,
    } else {
    }
    %c0 = arith.constant 0 : index
    %c0_1 = arith.constant 0 : index
    %3 = vector.load %arg10[%c0, %c0_1] : memref<8x128xf32, #tpu.memory_space<vmem>>, vector<8x128xf32>
    %c0_2 = arith.constant 0 : index
    %c0_3 = arith.constant 0 : index
    %4 = vector.load %arg2[%c0_2, %c0_3] : memref<8x512xbf16, #tpu.memory_space<vmem>>, vector<8x512xbf16>
    %c0_4 = arith.constant 0 : index
    %c0_5 = arith.constant 0 : index
    %5 = vector.load %arg3[%c0_4, %c0_5] : memref<512x128xbf16, #tpu.memory_space<vmem>>, vector<512x128xbf16>
    %cst = arith.constant dense<0.000000e+00> : vector<8x128xf32>
    %6 = tpu.matmul %4, %5, %cst {dimension_numbers = #tpu.dot_dimension_numbers<[1], [0], [0], [1], [0, 0, 1, 1], [], []>} : vector<8x512xbf16>, vector<512x128xbf16>, vector<8x128xf32> -> vector<8x128xf32>
    %7 = arith.addf %3, %6 : vector<8x128xf32>
    %c0_6 = arith.constant 0 : index
    %c0_7 = arith.constant 0 : index
    %8 = vector.load %arg10[%c0_6, %c0_7] : memref<8x128xf32, #tpu.memory_space<vmem>>, vector<8x128xf32>
    tpu.vector_store %arg10[%c0_6, %c0_7], %7 {strides = array<i32>} : memref<8x128xf32, #tpu.memory_space<vmem>>, vector<8x128xf32>,
    %c0_i32_8 = arith.constant 0 : i32
    %9 = arith.cmpi eq, %arg1, %c0_i32_8 : i32
    %10 = arith.extui %9 : i1 to i32
    %c0_i32_9 = arith.constant 0 : i32
    %11 = arith.cmpi ne, %10, %c0_i32_9 : i32
    scf.if %11 {
      %c0_10 = arith.constant 0 : index
      %c0_11 = arith.constant 0 : index
      %12 = vector.load %arg10[%c0_10, %c0_11] : memref<8x128xf32, #tpu.memory_space<vmem>>, vector<8x128xf32>
      %cst_12 = arith.constant 6.250000e-02 : f32
      %13 = vector.broadcast %cst_12 : f32 to vector<8x128xf32>
      %14 = arith.mulf %12, %13 : vector<8x128xf32>
      %15 = arith.truncf %14 : vector<8x128xf32> to vector<8x128xbf16>
      %c0_13 = arith.constant 0 : index
      %c0_14 = arith.constant 0 : index
      %16 = vector.load %arg4[%c0_13, %c0_14] : memref<128x256xbf16, #tpu.memory_space<vmem>>, vector<128x256xbf16>
      %cst_15 = arith.constant dense<0.000000e+00> : vector<8x256xf32>
      %17 = tpu.matmul %15, %16, %cst_15 {dimension_numbers = #tpu.dot_dimension_numbers<[1], [0], [0], [1], [0, 0, 1, 1], [], []>} : vector<8x128xbf16>, vector<128x256xbf16>, vector<8x256xf32> -> vector<8x256xf32>
      %c0_16 = arith.constant 0 : index
      %c0_17 = arith.constant 0 : index
      %18 = vector.load %arg5[%c0_16, %c0_17] : memref<1x256xf32, #tpu.memory_space<vmem>>, vector<1x256xf32>
      %19 = vector.broadcast %18 : vector<1x256xf32> to vector<8x256xf32>
      %20 = arith.addf %17, %19 : vector<8x256xf32>
      %cst_18 = arith.constant 0.000000e+00 : f32
      %21 = vector.broadcast %cst_18 : f32 to vector<8x256xf32>
      %22 = arith.maximumf %20, %21 : vector<8x256xf32>
      %23 = arith.truncf %22 : vector<8x256xf32> to vector<8x256xbf16>
      %c0_19 = arith.constant 0 : index
      %c0_20 = arith.constant 0 : index
      %24 = vector.load %arg6[%c0_19, %c0_20] : memref<256x128xbf16, #tpu.memory_space<vmem>>, vector<256x128xbf16>
      %cst_21 = arith.constant dense<0.000000e+00> : vector<8x128xf32>
      %25 = tpu.matmul %23, %24, %cst_21 {dimension_numbers = #tpu.dot_dimension_numbers<[1], [0], [0], [1], [0, 0, 1, 1], [], []>} : vector<8x256xbf16>, vector<256x128xbf16>, vector<8x128xf32> -> vector<8x128xf32>
      %c0_22 = arith.constant 0 : index
      %c0_23 = arith.constant 0 : index
      %26 = vector.load %arg7[%c0_22, %c0_23] : memref<1x128xf32, #tpu.memory_space<vmem>>, vector<1x128xf32>
      %27 = vector.broadcast %26 : vector<1x128xf32> to vector<8x128xf32>
      %28 = arith.addf %25, %27 : vector<8x128xf32>
      %c0_24 = arith.constant 0 : index
      %c0_25 = arith.constant 0 : index
      %29 = vector.load %arg8[%c0_24, %c0_25] : memref<8x128xf32, #tpu.memory_space<vmem>>, vector<8x128xf32>
      tpu.vector_store %arg8[%c0_24, %c0_25], %28 {strides = array<i32>} : memref<8x128xf32, #tpu.memory_space<vmem>>, vector<8x128xf32>,
      %c0_26 = arith.constant 0 : index
      %c0_27 = arith.constant 0 : index
      %30 = vector.load %arg9[%c0_26, %c0_27] : memref<8x256xf32, #tpu.memory_space<vmem>>, vector<8x256xf32>
      tpu.vector_store %arg9[%c0_26, %c0_27], %22 {strides = array<i32>} : memref<8x256xf32, #tpu.memory_space<vmem>>, vector<8x256xf32>,
    } else {
    }
    return
  }
  func.func @transform_0(%arg0: i32, %arg1: i32) -> (i32, i32) {
    %c0_i32 = arith.constant 0 : i32
    return %arg0, %arg1 : i32, i32
  }
  func.func @transform_1(%arg0: i32, %arg1: i32) -> (i32, i32) {
    %c0_i32 = arith.constant 0 : i32
    %c0_i32_0 = arith.constant 0 : i32
    %c0_i32_1 = arith.constant 0 : i32
    return %c0_i32, %c0_i32_0 : i32, i32
  }
  func.func @transform_2(%arg0: i32, %arg1: i32) -> (i32, i32) {
    %c0_i32 = arith.constant 0 : i32
    %c0_i32_0 = arith.constant 0 : i32
    %c0_i32_1 = arith.constant 0 : i32
    return %c0_i32, %c0_i32_0 : i32, i32
  }
  func.func @transform_3(%arg0: i32, %arg1: i32) -> (i32, i32) {
    %c0_i32 = arith.constant 0 : i32
    %c0_i32_0 = arith.constant 0 : i32
    %c0_i32_1 = arith.constant 0 : i32
    return %c0_i32, %c0_i32_0 : i32, i32
  }
  func.func @transform_4(%arg0: i32, %arg1: i32) -> (i32, i32) {
    %c0_i32 = arith.constant 0 : i32
    %c0_i32_0 = arith.constant 0 : i32
    %c0_i32_1 = arith.constant 0 : i32
    return %c0_i32, %c0_i32_0 : i32, i32
  }
  func.func @transform_5(%arg0: i32, %arg1: i32) -> (i32, i32) {
    %c0_i32 = arith.constant 0 : i32
    %c0_i32_0 = arith.constant 0 : i32
    %c0_i32_1 = arith.constant 0 : i32
    return %c0_i32, %c0_i32_0 : i32, i32
  }
  func.func @transform_6(%arg0: i32, %arg1: i32) -> (i32, i32) {
    %c0_i32 = arith.constant 0 : i32
    %c0_i32_0 = arith.constant 0 : i32
    return %arg0, %c0_i32 : i32, i32
  }
  func.func @transform_7(%arg0: i32, %arg1: i32) -> (i32, i32) {
    %c0_i32 = arith.constant 0 : i32
    %c0_i32_0 = arith.constant 0 : i32
    return %arg0, %c0_i32 : i32, i32
  }
}

module attributes {stable_mosaic.version = 11 : i64} {
  func.func @kernel(%arg0: i32, %arg1: i32, %arg2: memref<8x512xbf16, #tpu.memory_space<vmem>>, %arg3: memref<512x128xbf16, #tpu.memory_space<vmem>>, %arg4: memref<128x256xbf16, #tpu.memory_space<vmem>>, %arg5: memref<1x256xf32, #tpu.memory_space<vmem>>, %arg6: memref<256x128xbf16, #tpu.memory_space<vmem>>, %arg7: memref<1x128xf32, #tpu.memory_space<vmem>>, %arg8: memref<8x128xf32, #tpu.memory_space<vmem>>, %arg9: memref<8x256xf32, #tpu.memory_space<vmem>>, %arg10: memref<8x128xf32, #tpu.memory_space<vmem>>) attributes {dimension_semantics = [#tpu.dimension_semantics<parallel>, #tpu.dimension_semantics<arbitrary>], iteration_bounds = array<i64: 1, 1>, scalar_prefetch = 0 : i64, scratch_operands = 1 : i64, tpu.core_type = #tpu.core_type<tc>, window_params = [{transform_indices = @transform_0, window_bounds = array<i64: 8, 512>}, {pipeline_mode = #tpu.pipeline_mode<synchronous>, transform_indices = @transform_1, window_bounds = array<i64: 512, 128>}, {pipeline_mode = #tpu.pipeline_mode<synchronous>, transform_indices = @transform_2, window_bounds = array<i64: 128, 256>}, {pipeline_mode = #tpu.pipeline_mode<synchronous>, transform_indices = @transform_3, window_bounds = array<i64: 1, 256>}, {pipeline_mode = #tpu.pipeline_mode<synchronous>, transform_indices = @transform_4, window_bounds = array<i64: 256, 128>}, {pipeline_mode = #tpu.pipeline_mode<synchronous>, transform_indices = @transform_5, window_bounds = array<i64: 1, 128>}, {transform_indices = @transform_6, window_bounds = array<i64: 8, 128>}, {transform_indices = @transform_7, window_bounds = array<i64: 8, 256>}]} {
    %c0_i32 = arith.constant 0 : i32
    %0 = arith.cmpi eq, %arg1, %c0_i32 : i32
    %1 = arith.extui %0 : i1 to i32
    %c0_i32_0 = arith.constant 0 : i32
    %2 = arith.cmpi ne, %1, %c0_i32_0 : i32
    scf.if %2 {
      %cst_10 = arith.constant 0.000000e+00 : f32
      %12 = vector.broadcast %cst_10 : f32 to vector<8x128xf32>
      %c0_11 = arith.constant 0 : index
      %c0_12 = arith.constant 0 : index
      %13 = vector.load %arg10[%c0_11, %c0_12] : memref<8x128xf32, #tpu.memory_space<vmem>>, vector<8x128xf32>
      tpu.vector_store %arg10[%c0_11, %c0_12], %12 {strides = array<i32>} : memref<8x128xf32, #tpu.memory_space<vmem>>, vector<8x128xf32>,
    } else {
    }
    %c0 = arith.constant 0 : index
    %c0_1 = arith.constant 0 : index
    %3 = vector.load %arg10[%c0, %c0_1] : memref<8x128xf32, #tpu.memory_space<vmem>>, vector<8x128xf32>
    %c0_2 = arith.constant 0 : index
    %c0_3 = arith.constant 0 : index
    %4 = vector.load %arg2[%c0_2, %c0_3] : memref<8x512xbf16, #tpu.memory_space<vmem>>, vector<8x512xbf16>
    %c0_4 = arith.constant 0 : index
    %c0_5 = arith.constant 0 : index
    %5 = vector.load %arg3[%c0_4, %c0_5] : memref<512x128xbf16, #tpu.memory_space<vmem>>, vector<512x128xbf16>
    %cst = arith.constant dense<0.000000e+00> : vector<8x128xf32>
    %6 = tpu.matmul %4, %5, %cst {dimension_numbers = #tpu.dot_dimension_numbers<[1], [0], [0], [1], [0, 0, 1, 1], [], []>} : vector<8x512xbf16>, vector<512x128xbf16>, vector<8x128xf32> -> vector<8x128xf32>
    %7 = arith.addf %3, %6 : vector<8x128xf32>
    %c0_6 = arith.constant 0 : index
    %c0_7 = arith.constant 0 : index
    %8 = vector.load %arg10[%c0_6, %c0_7] : memref<8x128xf32, #tpu.memory_space<vmem>>, vector<8x128xf32>
    tpu.vector_store %arg10[%c0_6, %c0_7], %7 {strides = array<i32>} : memref<8x128xf32, #tpu.memory_space<vmem>>, vector<8x128xf32>,
    %c0_i32_8 = arith.constant 0 : i32
    %9 = arith.cmpi eq, %arg1, %c0_i32_8 : i32
    %10 = arith.extui %9 : i1 to i32
    %c0_i32_9 = arith.constant 0 : i32
    %11 = arith.cmpi ne, %10, %c0_i32_9 : i32
    scf.if %11 {
      %c0_10 = arith.constant 0 : index
      %c0_11 = arith.constant 0 : index
      %12 = vector.load %arg10[%c0_10, %c0_11] : memref<8x128xf32, #tpu.memory_space<vmem>>, vector<8x128xf32>
      %cst_12 = arith.constant 6.250000e-02 : f32
      %13 = vector.broadcast %cst_12 : f32 to vector<8x128xf32>
      %14 = arith.mulf %12, %13 : vector<8x128xf32>
      %15 = arith.truncf %14 : vector<8x128xf32> to vector<8x128xbf16>
      %c0_13 = arith.constant 0 : index
      %c0_14 = arith.constant 0 : index
      %16 = vector.load %arg4[%c0_13, %c0_14] : memref<128x256xbf16, #tpu.memory_space<vmem>>, vector<128x256xbf16>
      %cst_15 = arith.constant dense<0.000000e+00> : vector<8x256xf32>
      %17 = tpu.matmul %15, %16, %cst_15 {dimension_numbers = #tpu.dot_dimension_numbers<[1], [0], [0], [1], [0, 0, 1, 1], [], []>} : vector<8x128xbf16>, vector<128x256xbf16>, vector<8x256xf32> -> vector<8x256xf32>
      %c0_16 = arith.constant 0 : index
      %c0_17 = arith.constant 0 : index
      %18 = vector.load %arg5[%c0_16, %c0_17] : memref<1x256xf32, #tpu.memory_space<vmem>>, vector<1x256xf32>
      %19 = vector.broadcast %18 : vector<1x256xf32> to vector<8x256xf32>
      %20 = arith.addf %17, %19 : vector<8x256xf32>
      %cst_18 = arith.constant 0.000000e+00 : f32
      %21 = vector.broadcast %cst_18 : f32 to vector<8x256xf32>
      %22 = arith.maximumf %20, %21 : vector<8x256xf32>
      %23 = arith.truncf %22 : vector<8x256xf32> to vector<8x256xbf16>
      %c0_19 = arith.constant 0 : index
      %c0_20 = arith.constant 0 : index
      %24 = vector.load %arg6[%c0_19, %c0_20] : memref<256x128xbf16, #tpu.memory_space<vmem>>, vector<256x128xbf16>
      %cst_21 = arith.constant dense<0.000000e+00> : vector<8x128xf32>
      %25 = tpu.matmul %23, %24, %cst_21 {dimension_numbers = #tpu.dot_dimension_numbers<[1], [0], [0], [1], [0, 0, 1, 1], [], []>} : vector<8x256xbf16>, vector<256x128xbf16>, vector<8x128xf32> -> vector<8x128xf32>
      %c0_22 = arith.constant 0 : index
      %c0_23 = arith.constant 0 : index
      %26 = vector.load %arg7[%c0_22, %c0_23] : memref<1x128xf32, #tpu.memory_space<vmem>>, vector<1x128xf32>
      %27 = vector.broadcast %26 : vector<1x128xf32> to vector<8x128xf32>
      %28 = arith.addf %25, %27 : vector<8x128xf32>
      %c0_24 = arith.constant 0 : index
      %c0_25 = arith.constant 0 : index
      %29 = vector.load %arg8[%c0_24, %c0_25] : memref<8x128xf32, #tpu.memory_space<vmem>>, vector<8x128xf32>
      tpu.vector_store %arg8[%c0_24, %c0_25], %28 {strides = array<i32>} : memref<8x128xf32, #tpu.memory_space<vmem>>, vector<8x128xf32>,
      %c0_26 = arith.constant 0 : index
      %c0_27 = arith.constant 0 : index
      %30 = vector.load %arg9[%c0_26, %c0_27] : memref<8x256xf32, #tpu.memory_space<vmem>>, vector<8x256xf32>
      tpu.vector_store %arg9[%c0_26, %c0_27], %22 {strides = array<i32>} : memref<8x256xf32, #tpu.memory_space<vmem>>, vector<8x256xf32>,
    } else {
    }
    return
  }
  func.func @transform_0(%arg0: i32, %arg1: i32) -> (i32, i32) {
    %c0_i32 = arith.constant 0 : i32
    return %arg0, %arg1 : i32, i32
  }
  func.func @transform_1(%arg0: i32, %arg1: i32) -> (i32, i32) {
    %c0_i32 = arith.constant 0 : i32
    %c0_i32_0 = arith.constant 0 : i32
    %c0_i32_1 = arith.constant 0 : i32
    return %c0_i32, %c0_i32_0 : i32, i32
  }
  func.func @transform_2(%arg0: i32, %arg1: i32) -> (i32, i32) {
    %c0_i32 = arith.constant 0 : i32
    %c0_i32_0 = arith.constant 0 : i32
    %c0_i32_1 = arith.constant 0 : i32
    return %c0_i32, %c0_i32_0 : i32, i32
  }
  func.func @transform_3(%arg0: i32, %arg1: i32) -> (i32, i32) {
    %c0_i32 = arith.constant 0 : i32
    %c0_i32_0 = arith.constant 0 : i32
    %c0_i32_1 = arith.constant 0 : i32
    return %c0_i32, %c0_i32_0 : i32, i32
  }
  func.func @transform_4(%arg0: i32, %arg1: i32) -> (i32, i32) {
    %c0_i32 = arith.constant 0 : i32
    %c0_i32_0 = arith.constant 0 : i32
    %c0_i32_1 = arith.constant 0 : i32
    return %c0_i32, %c0_i32_0 : i32, i32
  }
  func.func @transform_5(%arg0: i32, %arg1: i32) -> (i32, i32) {
    %c0_i32 = arith.constant 0 : i32
    %c0_i32_0 = arith.constant 0 : i32
    %c0_i32_1 = arith.constant 0 : i32
    return %c0_i32, %c0_i32_0 : i32, i32
  }
  func.func @transform_6(%arg0: i32, %arg1: i32) -> (i32, i32) {
    %c0_i32 = arith.constant 0 : i32
    %c0_i32_0 = arith.constant 0 : i32
    return %arg0, %c0_i32 : i32, i32
  }
  func.func @transform_7(%arg0: i32, %arg1: i32) -> (i32, i32) {
    %c0_i32 = arith.constant 0 : i32
    %c0_i32_0 = arith.constant 0 : i32
    return %arg0, %c0_i32 : i32, i32
  }
}

</mosaic_0001>

<llo_original>
// kernel: tpu_custom_call.1
$region0: #{tpu_custom_call.1}
  #allocation0 [shape = 'u32[]', space=smem, size = 0x4, offset = 0x4, fixed_abs, tag = 'smem constant byte address 0x4 - core index']
  #allocation1 [shape = 'u32[144,128]{1,0:T(1,128)}', space=vmem, size = 0x12000, scoped, tag = 'internal scratch']
  #allocation2 [shape = 'f32[8,128]{1,0:T(8,128)}', space=vmem, size = 0x1000, scoped, tag = 'scratch operand']
  %s0 = inlined_call_operand.hbm [shape: bf16[8,512], index: 0, kind: input, shape index: {}]
  %s1 = inlined_call_operand.hbm [shape: bf16[512,128], index: 1, kind: input, shape index: {}]
  %s2 = inlined_call_operand.hbm [shape: bf16[128,256], index: 2, kind: input, shape index: {}]
  %s3 = inlined_call_operand.vmem [shape: f32[1,256], index: 3, kind: input, shape index: {}]
  %s4 = inlined_call_operand.hbm [shape: bf16[256,128], index: 4, kind: input, shape index: {}]
  %s5 = inlined_call_operand.vmem [shape: f32[1,128], index: 5, kind: input, shape index: {}]
  %s6 = inlined_call_operand.hbm [shape: f32[8,128], index: 6, kind: output, shape index: {0}]
  %s7 = inlined_call_operand.hbm [shape: f32[8,256], index: 7, kind: output, shape index: {1}]
  %8 = xla_tuple %s6, %s7
  %s9 = sld [smem:[#allocation0]]
  $region66: #{tpu_custom_call.1} parent=0
    _
  %s11 = ssub.s32 1, %s9
  %s12 = scalar_select 0, %s11, %s9
  $region1: #{tpu_custom_call.1} parent=0
    #allocation3 [shape = 'u8[8192]{0}', space=vmem, size = 0x2000, scoped, tag = 'input window, operand 0, single buffered']
    #allocation4 [shape = 's32[1]{0}', space=sflag, size = 0x4, scoped, tag = 'scoped memory for tpu_custom_call.1']
    #allocation5 [shape = 's32[1]{0}', space=sflag, size = 0x4, scoped, tag = 'scoped memory for tpu_custom_call.1']
    #allocation6 [shape = 'u8[131072]{0}', space=vmem, size = 0x20000, scoped, tag = 'input window, operand 1, single buffered']
    #allocation7 [shape = 's32[1]{0}', space=sflag, size = 0x4, scoped, tag = 'scoped memory for tpu_custom_call.1']
    #allocation8 [shape = 'u8[65536]{0}', space=vmem, size = 0x10000, scoped, tag = 'input window, operand 2, single buffered']
    #allocation9 [shape = 'u8[65536]{0}', space=vmem, size = 0x10000, scoped, tag = 'input window, operand 4, single buffered']
    #allocation10 [shape = 's32[1]{0}', space=sflag, size = 0x4, scoped, tag = 'scoped memory for tpu_custom_call.1']
    #allocation11 [shape = 'u8[4096]{0}', space=vmem, size = 0x1000, scoped, tag = 'output window, operand 0, single buffered']
    #allocation12 [shape = 'u8[8192]{0}', space=vmem, size = 0x2000, scoped, tag = 'output window, operand 1, single buffered']
    #allocation13 [shape = 's32[1]{0}', space=sflag, size = 0x4, scoped, tag = 'scoped memory for tpu_custom_call.1']
    %13 = vsyncpa [#allocation4], 0
    %14 = vsyncpa [#allocation7], 0
    %15 = vsyncpa [#allocation10], 0
    %16 = vsyncpa [#allocation5], 0
    %17 = vsyncpa [#allocation13], 0
    // Predicated region
    $region2: #{tpu_custom_call.1} parent=1 // pred_check
      _
    $region3: #{tpu_custom_call.1} parent=1 // pred_check_branch
      %19 = sbr.rel (0) target = $region5
    $region4: #{tpu_custom_call.1} parent=1 // pred_region
      %s21 = ssub.s32 256, 256
      %22 = vsyncadd [#allocation4], %s21
      %s24 = sshll.u32 [#allocation3], 4
      %s25 = int_to_ptr.vmem [resolvable:$true] %s24
      %27 = dma.hbm_to_vmem [thread:$0]  %s0, 256, %s25, [#allocation4]
    $region5: #{tpu_custom_call.1} parent=1 // pred_fallthru
      _
    // Predicated region
    $region6: #{tpu_custom_call.1} parent=1 // pred_check
      _
    $region7: #{tpu_custom_call.1} parent=1 // pred_check_branch
      %29 = sbr.rel (0) target = $region9
    $region8: #{tpu_custom_call.1} parent=1 // pred_region
      %s31 = ssub.s32 4096, 4096
      %32 = vsyncadd [#allocation7], %s31
      %s33 = sshll.u32 [#allocation6], 4
      %s34 = int_to_ptr.vmem [resolvable:$true] %s33
      %39 = dma.hbm_to_vmem [thread:$0]  %s1, 4096, %s34, [#allocation7], 64, 64, 4
    $region9: #{tpu_custom_call.1} parent=1 // pred_fallthru
      _
    // Predicated region
    $region10: #{tpu_custom_call.1} parent=1 // pred_check
      _
    $region11: #{tpu_custom_call.1} parent=1 // pred_check_branch
      %41 = sbr.rel (0) target = $region13
    $region12: #{tpu_custom_call.1} parent=1 // pred_region
      %s43 = ssub.s32 2048, 2048
      %44 = vsyncadd [#allocation7], %s43
      %s45 = sshll.u32 [#allocation8], 4
      %s46 = int_to_ptr.vmem [resolvable:$true] %s45
      %51 = dma.hbm_to_vmem [thread:$0]  %s2, 2048, %s46, [#allocation7], 128, 128, 8
    $region13: #{tpu_custom_call.1} parent=1 // pred_fallthru
      _
    // Predicated region
    $region14: #{tpu_custom_call.1} parent=1 // pred_check
      _
    $region15: #{tpu_custom_call.1} parent=1 // pred_check_branch
      %53 = sbr.rel (0) target = $region17
    $region16: #{tpu_custom_call.1} parent=1 // pred_region
      _
    $region17: #{tpu_custom_call.1} parent=1 // pred_fallthru
      _
    // Predicated region
    $region18: #{tpu_custom_call.1} parent=1 // pred_check
      _
    $region19: #{tpu_custom_call.1} parent=1 // pred_check_branch
      %55 = sbr.rel (0) target = $region21
    $region20: #{tpu_custom_call.1} parent=1 // pred_region
      %s57 = ssub.s32 2048, 2048
      %58 = vsyncadd [#allocation10], %s57
      %s59 = sshll.u32 [#allocation9], 4
      %s60 = int_to_ptr.vmem [resolvable:$true] %s59
      %65 = dma.hbm_to_vmem [thread:$0]  %s4, 2048, %s60, [#allocation10], 64, 64, 4
    $region21: #{tpu_custom_call.1} parent=1 // pred_fallthru
      _
    // Predicated region
    $region22: #{tpu_custom_call.1} parent=1 // pred_check
      _
    $region23: #{tpu_custom_call.1} parent=1 // pred_check_branch
      %67 = sbr.rel (0) target = $region25
    $region24: #{tpu_custom_call.1} parent=1 // pred_region
      _
    $region25: #{tpu_custom_call.1} parent=1 // pred_fallthru
      _
    // Predicated region
    $region26: #{tpu_custom_call.1} parent=1 // pred_check
      _
    $region27: #{tpu_custom_call.1} parent=1 // pred_check_branch
      %69 = sbr.rel (0) target = $region29
    $region28: #{tpu_custom_call.1} parent=1 // pred_region
      %70 = dma.done [#allocation4], 256
    $region29: #{tpu_custom_call.1} parent=1 // pred_fallthru
      _
    // Predicated region
    $region30: #{tpu_custom_call.1} parent=1 // pred_check
      _
    $region31: #{tpu_custom_call.1} parent=1 // pred_check_branch
      %72 = sbr.rel (0) target = $region33
    $region32: #{tpu_custom_call.1} parent=1 // pred_region
      %73 = dma.done [#allocation7], 4096
    $region33: #{tpu_custom_call.1} parent=1 // pred_fallthru
      _
    // Predicated region
    $region34: #{tpu_custom_call.1} parent=1 // pred_check
      _
    $region35: #{tpu_custom_call.1} parent=1 // pred_check_branch
      %75 = sbr.rel (0) target = $region37
    $region36: #{tpu_custom_call.1} parent=1 // pred_region
      %76 = dma.done [#allocation7], 2048
    $region37: #{tpu_custom_call.1} parent=1 // pred_fallthru
      _
    // Predicated region
    $region38: #{tpu_custom_call.1} parent=1 // pred_check
      _
    $region39: #{tpu_custom_call.1} parent=1 // pred_check_branch
      %78 = sbr.rel (0) target = $region41
    $region40: #{tpu_custom_call.1} parent=1 // pred_region
      %79 = dma.done [#allocation10], 2048
    $region41: #{tpu_custom_call.1} parent=1 // pred_fallthru
      _
    %p81 = scmp.eq.s32.totalorder 0, 0
    // Predicated region
    $region42: #{tpu_custom_call.1} parent=1 // pred_check
      %p82 = pneg %p81
    $region43: #{tpu_custom_call.1} parent=1 // pred_check_branch
      %84 = sbr.rel (%p82) target = $region45
    $region44: #{tpu_custom_call.1} parent=1 // pred_region
      %85 = vst [vmem:[#allocation2] sm:$0xff] 0.0
    $region45: #{tpu_custom_call.1} parent=1 // pred_fallthru
      _
    %v86 = vld [vmem:[#allocation2] sm:$0xff]
    %v87 = vld [vmem:[#allocation3] sm:$0xff]
    %v88 = vld [vmem:[#allocation3 + $0x8] sm:$0xff]
    %v89 = vld [vmem:[#allocation6] sm:$0xf]
    %v90 = vld [vmem:[#allocation6 + $0x4] sm:$0xf]
    %v91 = vld [vmem:[#allocation6 + $0x8] sm:$0xf]
    %v92 = vld [vmem:[#allocation6 + $0xc] sm:$0xf]
    %v93 = vld [vmem:[#allocation6 + $0x10] sm:$0xf]
    %v94 = vld [vmem:[#allocation6 + $0x14] sm:$0xf]
    %v95 = vld [vmem:[#allocation6 + $0x18] sm:$0xf]
    %v96 = vld [vmem:[#allocation6 + $0x1c] sm:$0xf]
    %v97 = vld [vmem:[#allocation6 + $0x20] sm:$0xf]
    %v98 = vld [vmem:[#allocation6 + $0x24] sm:$0xf]
    %v99 = vld [vmem:[#allocation6 + $0x28] sm:$0xf]
    %v100 = vld [vmem:[#allocation6 + $0x2c] sm:$0xf]
    %v101 = vld [vmem:[#allocation6 + $0x30] sm:$0xf]
    %v102 = vld [vmem:[#allocation6 + $0x34] sm:$0xf]
    %v103 = vld [vmem:[#allocation6 + $0x38] sm:$0xf]
    %v104 = vld [vmem:[#allocation6 + $0x3c] sm:$0xf]
    %v105 = vld [vmem:[#allocation6 + $0x40] sm:$0xf]
    %v106 = vld [vmem:[#allocation6 + $0x44] sm:$0xf]
    %v107 = vld [vmem:[#allocation6 + $0x48] sm:$0xf]
    %v108 = vld [vmem:[#allocation6 + $0x4c] sm:$0xf]
    %v109 = vld [vmem:[#allocation6 + $0x50] sm:$0xf]
    %v110 = vld [vmem:[#allocation6 + $0x54] sm:$0xf]
    %v111 = vld [vmem:[#allocation6 + $0x58] sm:$0xf]
    %v112 = vld [vmem:[#allocation6 + $0x5c] sm:$0xf]
    %v113 = vld [vmem:[#allocation6 + $0x60] sm:$0xf]
    %v114 = vld [vmem:[#allocation6 + $0x64] sm:$0xf]
    %v115 = vld [vmem:[#allocation6 + $0x68] sm:$0xf]
    %v116 = vld [vmem:[#allocation6 + $0x6c] sm:$0xf]
    %v117 = vld [vmem:[#allocation6 + $0x70] sm:$0xf]
    %v118 = vld [vmem:[#allocation6 + $0x74] sm:$0xf]
    %v119 = vld [vmem:[#allocation6 + $0x78] sm:$0xf]
    %v120 = vld [vmem:[#allocation6 + $0x7c] sm:$0xf]
    %v121 = vld [vmem:[#allocation6 + $0x80] sm:$0xf]
    %v122 = vld [vmem:[#allocation6 + $0x84] sm:$0xf]
    %v123 = vld [vmem:[#allocation6 + $0x88] sm:$0xf]
    %v124 = vld [vmem:[#allocation6 + $0x8c] sm:$0xf]
    %v125 = vld [vmem:[#allocation6 + $0x90] sm:$0xf]
    %v126 = vld [vmem:[#allocation6 + $0x94] sm:$0xf]
    %v127 = vld [vmem:[#allocation6 + $0x98] sm:$0xf]
    %v128 = vld [vmem:[#allocation6 + $0x9c] sm:$0xf]
    %v129 = vld [vmem:[#allocation6 + $0xa0] sm:$0xf]
    %v130 = vld [vmem:[#allocation6 + $0xa4] sm:$0xf]
    %v131 = vld [vmem:[#allocation6 + $0xa8] sm:$0xf]
    %v132 = vld [vmem:[#allocation6 + $0xac] sm:$0xf]
    %v133 = vld [vmem:[#allocation6 + $0xb0] sm:$0xf]
    %v134 = vld [vmem:[#allocation6 + $0xb4] sm:$0xf]
    %v135 = vld [vmem:[#allocation6 + $0xb8] sm:$0xf]
    %v136 = vld [vmem:[#allocation6 + $0xbc] sm:$0xf]
    %v137 = vld [vmem:[#allocation6 + $0xc0] sm:$0xf]
    %v138 = vld [vmem:[#allocation6 + $0xc4] sm:$0xf]
    %v139 = vld [vmem:[#allocation6 + $0xc8] sm:$0xf]
    %v140 = vld [vmem:[#allocation6 + $0xcc] sm:$0xf]
    %v141 = vld [vmem:[#allocation6 + $0xd0] sm:$0xf]
    %v142 = vld [vmem:[#allocation6 + $0xd4] sm:$0xf]
    %v143 = vld [vmem:[#allocation6 + $0xd8] sm:$0xf]
    %v144 = vld [vmem:[#allocation6 + $0xdc] sm:$0xf]
    %v145 = vld [vmem:[#allocation6 + $0xe0] sm:$0xf]
    %v146 = vld [vmem:[#allocation6 + $0xe4] sm:$0xf]
    %v147 = vld [vmem:[#allocation6 + $0xe8] sm:$0xf]
    %v148 = vld [vmem:[#allocation6 + $0xec] sm:$0xf]
    %v149 = vld [vmem:[#allocation6 + $0xf0] sm:$0xf]
    %v150 = vld [vmem:[#allocation6 + $0xf4] sm:$0xf]
    %v151 = vld [vmem:[#allocation6 + $0xf8] sm:$0xf]
    %v152 = vld [vmem:[#allocation6 + $0xfc] sm:$0xf]
    %v155 = vunpack.c.l.b16 %v87
    %v156 = vunpack.c.h.b16 %v87
    %v157 = vunpack.c.l.b16 %v88
    %v158 = vunpack.c.h.b16 %v88
    %v159 = vpack.c.b16 %v155, %v155
    %v160 = vpack.c.b16 %v156, %v156
    %v161 = vpack.c.b16 %v157, %v157
    %v162 = vpack.c.b16 %v158, %v158
    %v231 = vunpack.c.l.b16 %v89
    %v232 = vunpack.c.l.b16 %v90
    %v233 = vunpack.c.l.b16 %v91
    %v234 = vunpack.c.l.b16 %v92
    %v235 = vunpack.c.l.b16 %v93
    %v236 = vunpack.c.l.b16 %v94
    %v237 = vunpack.c.l.b16 %v95
    %v238 = vunpack.c.l.b16 %v96
    %v239 = vunpack.c.l.b16 %v97
    %v240 = vunpack.c.l.b16 %v98
    %v241 = vunpack.c.l.b16 %v99
    %v242 = vunpack.c.l.b16 %v100
    %v243 = vunpack.c.l.b16 %v101
    %v244 = vunpack.c.l.b16 %v102
    %v245 = vunpack.c.l.b16 %v103
    %v246 = vunpack.c.l.b16 %v104
    %v247 = vunpack.c.l.b16 %v105
    %v248 = vunpack.c.l.b16 %v106
    %v249 = vunpack.c.l.b16 %v107
    %v250 = vunpack.c.l.b16 %v108
    %v251 = vunpack.c.l.b16 %v109
    %v252 = vunpack.c.l.b16 %v110
    %v253 = vunpack.c.l.b16 %v111
    %v254 = vunpack.c.l.b16 %v112
    %v255 = vunpack.c.l.b16 %v113
    %v256 = vunpack.c.l.b16 %v114
    %v257 = vunpack.c.l.b16 %v115
    %v258 = vunpack.c.l.b16 %v116
    %v259 = vunpack.c.l.b16 %v117
    %v260 = vunpack.c.l.b16 %v118
    %v261 = vunpack.c.l.b16 %v119
    %v262 = vunpack.c.l.b16 %v120
    %v263 = vunpack.c.l.b16 %v121
    %v264 = vunpack.c.l.b16 %v122
    %v265 = vunpack.c.l.b16 %v123
    %v266 = vunpack.c.l.b16 %v124
    %v267 = vunpack.c.l.b16 %v125
    %v268 = vunpack.c.l.b16 %v126
    %v269 = vunpack.c.l.b16 %v127
    %v270 = vunpack.c.l.b16 %v128
    %v271 = vunpack.c.l.b16 %v129
    %v272 = vunpack.c.l.b16 %v130
    %v273 = vunpack.c.l.b16 %v131
    %v274 = vunpack.c.l.b16 %v132
    %v275 = vunpack.c.l.b16 %v133
    %v276 = vunpack.c.l.b16 %v134
    %v277 = vunpack.c.l.b16 %v135
    %v278 = vunpack.c.l.b16 %v136
    %v279 = vunpack.c.l.b16 %v137
    %v280 = vunpack.c.l.b16 %v138
    %v281 = vunpack.c.l.b16 %v139
    %v282 = vunpack.c.l.b16 %v140
    %v283 = vunpack.c.l.b16 %v141
    %v284 = vunpack.c.l.b16 %v142
    %v285 = vunpack.c.l.b16 %v143
    %v286 = vunpack.c.l.b16 %v144
    %v287 = vunpack.c.l.b16 %v145
    %v288 = vunpack.c.l.b16 %v146
    %v289 = vunpack.c.l.b16 %v147
    %v290 = vunpack.c.l.b16 %v148
    %v291 = vunpack.c.l.b16 %v149
    %v292 = vunpack.c.l.b16 %v150
    %v293 = vunpack.c.l.b16 %v151
    %v294 = vunpack.c.l.b16 %v152
    %v295 = vpack.c.b16 %v232, %v231
    %v296 = vpack.c.b16 %v234, %v233
    %v297 = vpack.c.b16 %v236, %v235
    %v298 = vpack.c.b16 %v238, %v237
    %v299 = vpack.c.b16 %v240, %v239
    %v300 = vpack.c.b16 %v242, %v241
    %v301 = vpack.c.b16 %v244, %v243
    %v302 = vpack.c.b16 %v246, %v245
    %v303 = vpack.c.b16 %v248, %v247
    %v304 = vpack.c.b16 %v250, %v249
    %v305 = vpack.c.b16 %v252, %v251
    %v306 = vpack.c.b16 %v254, %v253
    %v307 = vpack.c.b16 %v256, %v255
    %v308 = vpack.c.b16 %v258, %v257
    %v309 = vpack.c.b16 %v260, %v259
    %v310 = vpack.c.b16 %v262, %v261
    %v311 = vpack.c.b16 %v264, %v263
    %v312 = vpack.c.b16 %v266, %v265
    %v313 = vpack.c.b16 %v268, %v267
    %v314 = vpack.c.b16 %v270, %v269
    %v315 = vpack.c.b16 %v272, %v271
    %v316 = vpack.c.b16 %v274, %v273
    %v317 = vpack.c.b16 %v276, %v275
    %v318 = vpack.c.b16 %v278, %v277
    %v319 = vpack.c.b16 %v280, %v279
    %v320 = vpack.c.b16 %v282, %v281
    %v321 = vpack.c.b16 %v284, %v283
    %v322 = vpack.c.b16 %v286, %v285
    %v323 = vpack.c.b16 %v288, %v287
    %v324 = vpack.c.b16 %v290, %v289
    %v325 = vpack.c.b16 %v292, %v291
    %v326 = vpack.c.b16 %v294, %v293
    %359 = vmatprep.subr.bf16.mxu0 0
    %360 = vmatpush1.bf16.msra.mxu0 %v295
    %361 = vmatprep.subr.bf16.mxu0 0
    %362 = vmatpush1.bf16.msra.mxu0 %v296
    %363 = vmatprep.subr.bf16.mxu0 0
    %364 = vmatpush1.bf16.msra.mxu0 %v297
    %365 = vmatprep.subr.bf16.mxu0 0
    %366 = vmatpush1.bf16.msra.mxu0 %v298
    %367 = vmatprep.subr.bf16.mxu0 0
    %368 = vmatpush1.bf16.msra.mxu0 %v299
    %369 = vmatprep.subr.bf16.mxu0 0
    %370 = vmatpush1.bf16.msra.mxu0 %v300
    %371 = vmatprep.subr.bf16.mxu0 0
    %372 = vmatpush1.bf16.msra.mxu0 %v301
    %373 = vmatprep.subr.bf16.mxu0 0
    %374 = vmatpush1.bf16.msra.mxu0 %v302
    %375 = vmatprep.subr.bf16.mxu0 0
    %376 = vmatpush1.bf16.msra.mxu0 %v303
    %377 = vmatprep.subr.bf16.mxu0 0
    %378 = vmatpush1.bf16.msra.mxu0 %v304
    %379 = vmatprep.subr.bf16.mxu0 0
    %380 = vmatpush1.bf16.msra.mxu0 %v305
    %381 = vmatprep.subr.bf16.mxu0 0
    %382 = vmatpush1.bf16.msra.mxu0 %v306
    %383 = vmatprep.subr.bf16.mxu0 0
    %384 = vmatpush1.bf16.msra.mxu0 %v307
    %385 = vmatprep.subr.bf16.mxu0 0
    %386 = vmatpush1.bf16.msra.mxu0 %v308
    %387 = vmatprep.subr.bf16.mxu0 0
    %388 = vmatpush1.bf16.msra.mxu0 %v309
    %389 = vmatprep.subr.bf16.mxu0 0
    %390 = vmatpush1.bf16.msra.mxu0 %v310
    %391 = vmatprep.mubr.bf16.mxu0 %v160
    %392 = vmatmul.mubr.bf16.gmra.mrb[0].mxu0 %v159
    %v393 = vpop.f32.mrb[0].mxu0
    %v394 = vadd.f32 0.0, %v393
    %v395 = vpop.f32.mrb[0].mxu0
    %v396 = vpop.f32.mrb[0].mxu0
    %v397 = vpop.f32.mrb[0].mxu0
    %398 = vdwg.mxu0
    %399 = vmatprep.subr.bf16.mxu0 0
    %400 = vmatpush1.bf16.msra.mxu0 %v311
    %401 = vmatprep.subr.bf16.mxu0 0
    %402 = vmatpush1.bf16.msra.mxu0 %v312
    %403 = vmatprep.subr.bf16.mxu0 0
    %404 = vmatpush1.bf16.msra.mxu0 %v313
    %405 = vmatprep.subr.bf16.mxu0 0
    %406 = vmatpush1.bf16.msra.mxu0 %v314
    %407 = vmatprep.subr.bf16.mxu0 0
    %408 = vmatpush1.bf16.msra.mxu0 %v315
    %409 = vmatprep.subr.bf16.mxu0 0
    %410 = vmatpush1.bf16.msra.mxu0 %v316
    %411 = vmatprep.subr.bf16.mxu0 0
    %412 = vmatpush1.bf16.msra.mxu0 %v317
    %413 = vmatprep.subr.bf16.mxu0 0
    %414 = vmatpush1.bf16.msra.mxu0 %v318
    %415 = vmatprep.subr.bf16.mxu0 0
    %416 = vmatpush1.bf16.msra.mxu0 %v319
    %417 = vmatprep.subr.bf16.mxu0 0
    %418 = vmatpush1.bf16.msra.mxu0 %v320
    %419 = vmatprep.subr.bf16.mxu0 0
    %420 = vmatpush1.bf16.msra.mxu0 %v321
    %421 = vmatprep.subr.bf16.mxu0 0
    %422 = vmatpush1.bf16.msra.mxu0 %v322
    %423 = vmatprep.subr.bf16.mxu0 0
    %424 = vmatpush1.bf16.msra.mxu0 %v323
    %425 = vmatprep.subr.bf16.mxu0 0
    %426 = vmatpush1.bf16.msra.mxu0 %v324
    %427 = vmatprep.subr.bf16.mxu0 0
    %428 = vmatpush1.bf16.msra.mxu0 %v325
    %429 = vmatprep.subr.bf16.mxu0 0
    %430 = vmatpush1.bf16.msra.mxu0 %v326
    %431 = vmatprep.mubr.bf16.mxu0 %v162
    %432 = vmatmul.mubr.bf16.gmra.mrb[0].mxu0 %v161
    %v433 = vpop.f32.mrb[0].mxu0
    %v434 = vadd.f32 %v394, %v433
    %v435 = vpop.f32.mrb[0].mxu0
    %v436 = vpop.f32.mrb[0].mxu0
    %v437 = vpop.f32.mrb[0].mxu0
    %438 = vdwg.mxu0
    %v439 = vadd.f32 %v86, %v434
    %440 = vst [vmem:[#allocation2] sm:$0xff] %v439
    // Predicated region
    $region46: #{tpu_custom_call.1} parent=1 // pred_check
      %p441 = pneg %p81
    $region47: #{tpu_custom_call.1} parent=1 // pred_check_branch
      %443 = sbr.rel (%p441) target = $region49
    $region48: #{tpu_custom_call.1} parent=1 // pred_region
      %v444 = vld [vmem:[#allocation2] sm:$0xff]
      %v445 = vmul.f32 %v444, 0.0625
      %v446 = vpack.c.bf16 %v445, %v445
      %v447 = vld [vmem:[#allocation8] sm:$0xff]
      %v448 = vld [vmem:[#allocation8 + $0x8] sm:$0xff]
      %v449 = vld [vmem:[#allocation8 + $0x10] sm:$0xff]
      %v450 = vld [vmem:[#allocation8 + $0x18] sm:$0xff]
      %v451 = vld [vmem:[#allocation8 + $0x20] sm:$0xff]
      %v452 = vld [vmem:[#allocation8 + $0x28] sm:$0xff]
      %v453 = vld [vmem:[#allocation8 + $0x30] sm:$0xff]
      %v454 = vld [vmem:[#allocation8 + $0x38] sm:$0xff]
      %v455 = vld [vmem:[#allocation8 + $0x40] sm:$0xff]
      %v456 = vld [vmem:[#allocation8 + $0x48] sm:$0xff]
      %v457 = vld [vmem:[#allocation8 + $0x50] sm:$0xff]
      %v458 = vld [vmem:[#allocation8 + $0x58] sm:$0xff]
      %v459 = vld [vmem:[#allocation8 + $0x60] sm:$0xff]
      %v460 = vld [vmem:[#allocation8 + $0x68] sm:$0xff]
      %v461 = vld [vmem:[#allocation8 + $0x70] sm:$0xff]
      %v462 = vld [vmem:[#allocation8 + $0x78] sm:$0xff]
      %v463 = vld [vmem:[%s3] sm:$0x3]
      %v465 = vlaneseq
      %v466 = vshrl.u32 %v465, 7
      %v467 = vsub.s32 0, %v466
      %v468 = vrot.slane %v463, %v467
      %v469 = vlaneseq
      %v470 = vshrl.u32 %v469, 7
      %v471 = vsub.s32 1, %v470
      %v472 = vrot.slane %v463, %v471
      %v491 = vunpack.c.l.b16 %v447
      %v492 = vunpack.c.h.b16 %v447
      %v493 = vunpack.c.l.b16 %v448
      %v494 = vunpack.c.h.b16 %v448
      %v495 = vunpack.c.l.b16 %v449
      %v496 = vunpack.c.h.b16 %v449
      %v497 = vunpack.c.l.b16 %v450
      %v498 = vunpack.c.h.b16 %v450
      %v499 = vunpack.c.l.b16 %v451
      %v500 = vunpack.c.h.b16 %v451
      %v501 = vunpack.c.l.b16 %v452
      %v502 = vunpack.c.h.b16 %v452
      %v503 = vunpack.c.l.b16 %v453
      %v504 = vunpack.c.h.b16 %v453
      %v505 = vunpack.c.l.b16 %v454
      %v506 = vunpack.c.h.b16 %v454
      %v507 = vunpack.c.l.b16 %v455
      %v508 = vunpack.c.h.b16 %v455
      %v509 = vunpack.c.l.b16 %v456
      %v510 = vunpack.c.h.b16 %v456
      %v511 = vunpack.c.l.b16 %v457
      %v512 = vunpack.c.h.b16 %v457
      %v513 = vunpack.c.l.b16 %v458
      %v514 = vunpack.c.h.b16 %v458
      %v515 = vunpack.c.l.b16 %v459
      %v516 = vunpack.c.h.b16 %v459
      %v517 = vunpack.c.l.b16 %v460
      %v518 = vunpack.c.h.b16 %v460
      %v519 = vunpack.c.l.b16 %v461
      %v520 = vunpack.c.h.b16 %v461
      %v521 = vunpack.c.l.b16 %v462
      %v522 = vunpack.c.h.b16 %v462
      %v523 = vpack.c.b16 %v493, %v491
      %v524 = vpack.c.b16 %v494, %v492
      %v525 = vpack.c.b16 %v497, %v495
      %v526 = vpack.c.b16 %v498, %v496
      %v527 = vpack.c.b16 %v501, %v499
      %v528 = vpack.c.b16 %v502, %v500
      %v529 = vpack.c.b16 %v505, %v503
      %v530 = vpack.c.b16 %v506, %v504
      %v531 = vpack.c.b16 %v509, %v507
      %v532 = vpack.c.b16 %v510, %v508
      %v533 = vpack.c.b16 %v513, %v511
      %v534 = vpack.c.b16 %v514, %v512
      %v535 = vpack.c.b16 %v517, %v515
      %v536 = vpack.c.b16 %v518, %v516
      %v537 = vpack.c.b16 %v521, %v519
      %v538 = vpack.c.b16 %v522, %v520
      %555 = vmatprep.subr.bf16.mxu0 %v524
      %556 = vmatpush1.bf16.msra.mxu0 %v523
      %557 = vmatprep.subr.bf16.mxu0 %v526
      %558 = vmatpush1.bf16.msra.mxu0 %v525
      %559 = vmatprep.subr.bf16.mxu0 %v528
      %560 = vmatpush1.bf16.msra.mxu0 %v527
      %561 = vmatprep.subr.bf16.mxu0 %v530
      %562 = vmatpush1.bf16.msra.mxu0 %v529
      %563 = vmatprep.subr.bf16.mxu0 %v532
      %564 = vmatpush1.bf16.msra.mxu0 %v531
      %565 = vmatprep.subr.bf16.mxu0 %v534
      %566 = vmatpush1.bf16.msra.mxu0 %v533
      %567 = vmatprep.subr.bf16.mxu0 %v536
      %568 = vmatpush1.bf16.msra.mxu0 %v535
      %569 = vmatprep.subr.bf16.mxu0 %v538
      %570 = vmatpush1.bf16.msra.mxu0 %v537
      %571 = vmatprep.subr.bf16.mxu0 0
      %572 = vmatpush1.bf16.msra.mxu0 0
      %573 = vmatprep.subr.bf16.mxu0 0
      %574 = vmatpush1.bf16.msra.mxu0 0
      %575 = vmatprep.subr.bf16.mxu0 0
      %576 = vmatpush1.bf16.msra.mxu0 0
      %577 = vmatprep.subr.bf16.mxu0 0
      %578 = vmatpush1.bf16.msra.mxu0 0
      %579 = vmatprep.subr.bf16.mxu0 0
      %580 = vmatpush1.bf16.msra.mxu0 0
      %581 = vmatprep.subr.bf16.mxu0 0
      %582 = vmatpush1.bf16.msra.mxu0 0
      %583 = vmatprep.subr.bf16.mxu0 0
      %584 = vmatpush1.bf16.msra.mxu0 0
      %585 = vmatprep.subr.bf16.mxu0 0
      %586 = vmatpush1.bf16.msra.mxu0 0
      %587 = vmatprep.mubr.bf16.mxu0 0
      %588 = vmatmul.mubr.bf16.gmra.mrb[0].mxu0 %v446
      %v589 = vpop.f32.mrb[0].mxu0
      %v590 = vadd.f32 %v468, %v589
      %v591 = vpop.f32.mrb[0].mxu0
      %v592 = vadd.f32 %v472, %v591
      %v593 = vpop.f32.mrb[0].mxu0
      %v594 = vpop.f32.mrb[0].mxu0
      %595 = vdwg.mxu0
      %v596 = vmax.f32 %v590, 0.0
      %v597 = vmax.f32 %v592, 0.0
      %v598 = vpack.c.bf16 %v596, %v596
      %v599 = vpack.c.bf16 %v597, %v597
      %v600 = vld [vmem:[#allocation9] sm:$0xf]
      %v601 = vld [vmem:[#allocation9 + $0x4] sm:$0xf]
      %v602 = vld [vmem:[#allocation9 + $0x8] sm:$0xf]
      %v603 = vld [vmem:[#allocation9 + $0xc] sm:$0xf]
      %v604 = vld [vmem:[#allocation9 + $0x10] sm:$0xf]
      %v605 = vld [vmem:[#allocation9 + $0x14] sm:$0xf]
      %v606 = vld [vmem:[#allocation9 + $0x18] sm:$0xf]
      %v607 = vld [vmem:[#allocation9 + $0x1c] sm:$0xf]
      %v608 = vld [vmem:[#allocation9 + $0x20] sm:$0xf]
      %v609 = vld [vmem:[#allocation9 + $0x24] sm:$0xf]
      %v610 = vld [vmem:[#allocation9 + $0x28] sm:$0xf]
      %v611 = vld [vmem:[#allocation9 + $0x2c] sm:$0xf]
      %v612 = vld [vmem:[#allocation9 + $0x30] sm:$0xf]
      %v613 = vld [vmem:[#allocation9 + $0x34] sm:$0xf]
      %v614 = vld [vmem:[#allocation9 + $0x38] sm:$0xf]
      %v615 = vld [vmem:[#allocation9 + $0x3c] sm:$0xf]
      %v616 = vld [vmem:[#allocation9 + $0x40] sm:$0xf]
      %v617 = vld [vmem:[#allocation9 + $0x44] sm:$0xf]
      %v618 = vld [vmem:[#allocation9 + $0x48] sm:$0xf]
      %v619 = vld [vmem:[#allocation9 + $0x4c] sm:$0xf]
      %v620 = vld [vmem:[#allocation9 + $0x50] sm:$0xf]
      %v621 = vld [vmem:[#allocation9 + $0x54] sm:$0xf]
      %v622 = vld [vmem:[#allocation9 + $0x58] sm:$0xf]
      %v623 = vld [vmem:[#allocation9 + $0x5c] sm:$0xf]
      %v624 = vld [vmem:[#allocation9 + $0x60] sm:$0xf]
      %v625 = vld [vmem:[#allocation9 + $0x64] sm:$0xf]
      %v626 = vld [vmem:[#allocation9 + $0x68] sm:$0xf]
      %v627 = vld [vmem:[#allocation9 + $0x6c] sm:$0xf]
      %v628 = vld [vmem:[#allocation9 + $0x70] sm:$0xf]
      %v629 = vld [vmem:[#allocation9 + $0x74] sm:$0xf]
      %v630 = vld [vmem:[#allocation9 + $0x78] sm:$0xf]
      %v631 = vld [vmem:[#allocation9 + $0x7c] sm:$0xf]
      %v632 = vld [vmem:[%s5] sm:$0x1]
      %v634 = vlaneseq
      %v635 = vshrl.u32 %v634, 7
      %v636 = vsub.s32 0, %v635
      %v637 = vrot.slane %v632, %v636
      %v671 = vunpack.c.l.b16 %v600
      %v672 = vunpack.c.l.b16 %v601
      %v673 = vunpack.c.l.b16 %v602
      %v674 = vunpack.c.l.b16 %v603
      %v675 = vunpack.c.l.b16 %v604
      %v676 = vunpack.c.l.b16 %v605
      %v677 = vunpack.c.l.b16 %v606
      %v678 = vunpack.c.l.b16 %v607
      %v679 = vunpack.c.l.b16 %v608
      %v680 = vunpack.c.l.b16 %v609
      %v681 = vunpack.c.l.b16 %v610
      %v682 = vunpack.c.l.b16 %v611
      %v683 = vunpack.c.l.b16 %v612
      %v684 = vunpack.c.l.b16 %v613
      %v685 = vunpack.c.l.b16 %v614
      %v686 = vunpack.c.l.b16 %v615
      %v687 = vunpack.c.l.b16 %v616
      %v688 = vunpack.c.l.b16 %v617
      %v689 = vunpack.c.l.b16 %v618
      %v690 = vunpack.c.l.b16 %v619
      %v691 = vunpack.c.l.b16 %v620
      %v692 = vunpack.c.l.b16 %v621
      %v693 = vunpack.c.l.b16 %v622
      %v694 = vunpack.c.l.b16 %v623
      %v695 = vunpack.c.l.b16 %v624
      %v696 = vunpack.c.l.b16 %v625
      %v697 = vunpack.c.l.b16 %v626
      %v698 = vunpack.c.l.b16 %v627
      %v699 = vunpack.c.l.b16 %v628
      %v700 = vunpack.c.l.b16 %v629
      %v701 = vunpack.c.l.b16 %v630
      %v702 = vunpack.c.l.b16 %v631
      %v703 = vpack.c.b16 %v672, %v671
      %v704 = vpack.c.b16 %v674, %v673
      %v705 = vpack.c.b16 %v676, %v675
      %v706 = vpack.c.b16 %v678, %v677
      %v707 = vpack.c.b16 %v680, %v679
      %v708 = vpack.c.b16 %v682, %v681
      %v709 = vpack.c.b16 %v684, %v683
      %v710 = vpack.c.b16 %v686, %v685
      %v711 = vpack.c.b16 %v688, %v687
      %v712 = vpack.c.b16 %v690, %v689
      %v713 = vpack.c.b16 %v692, %v691
      %v714 = vpack.c.b16 %v694, %v693
      %v715 = vpack.c.b16 %v696, %v695
      %v716 = vpack.c.b16 %v698, %v697
      %v717 = vpack.c.b16 %v700, %v699
      %v718 = vpack.c.b16 %v702, %v701
      %735 = vmatprep.subr.bf16.mxu0 0
      %736 = vmatpush1.bf16.msra.mxu0 %v703
      %737 = vmatprep.subr.bf16.mxu0 0
      %738 = vmatpush1.bf16.msra.mxu0 %v704
      %739 = vmatprep.subr.bf16.mxu0 0
      %740 = vmatpush1.bf16.msra.mxu0 %v705
      %741 = vmatprep.subr.bf16.mxu0 0
      %742 = vmatpush1.bf16.msra.mxu0 %v706
      %743 = vmatprep.subr.bf16.mxu0 0
      %744 = vmatpush1.bf16.msra.mxu0 %v707
      %745 = vmatprep.subr.bf16.mxu0 0
      %746 = vmatpush1.bf16.msra.mxu0 %v708
      %747 = vmatprep.subr.bf16.mxu0 0
      %748 = vmatpush1.bf16.msra.mxu0 %v709
      %749 = vmatprep.subr.bf16.mxu0 0
      %750 = vmatpush1.bf16.msra.mxu0 %v710
      %751 = vmatprep.subr.bf16.mxu0 0
      %752 = vmatpush1.bf16.msra.mxu0 %v711
      %753 = vmatprep.subr.bf16.mxu0 0
      %754 = vmatpush1.bf16.msra.mxu0 %v712
      %755 = vmatprep.subr.bf16.mxu0 0
      %756 = vmatpush1.bf16.msra.mxu0 %v713
      %757 = vmatprep.subr.bf16.mxu0 0
      %758 = vmatpush1.bf16.msra.mxu0 %v714
      %759 = vmatprep.subr.bf16.mxu0 0
      %760 = vmatpush1.bf16.msra.mxu0 %v715
      %761 = vmatprep.subr.bf16.mxu0 0
      %762 = vmatpush1.bf16.msra.mxu0 %v716
      %763 = vmatprep.subr.bf16.mxu0 0
      %764 = vmatpush1.bf16.msra.mxu0 %v717
      %765 = vmatprep.subr.bf16.mxu0 0
      %766 = vmatpush1.bf16.msra.mxu0 %v718
      %767 = vmatprep.mubr.bf16.mxu0 %v599
      %768 = vmatmul.mubr.bf16.gmra.mrb[0].mxu0 %v598
      %v769 = vpop.f32.mrb[0].mxu0
      %v770 = vadd.f32 %v637, %v769
      %v771 = vpop.f32.mrb[0].mxu0
      %v772 = vpop.f32.mrb[0].mxu0
      %v773 = vpop.f32.mrb[0].mxu0
      %774 = vdwg.mxu0
      %775 = vst [vmem:[#allocation11] sm:$0xff] %v770
      %776 = vst [vmem:[#allocation12] sm:$0xff] %v596
      %777 = vst [vmem:[#allocation12 + $0x8] sm:$0xff] %v597
    $region49: #{tpu_custom_call.1} parent=1 // pred_fallthru
      _
    // Predicated region
    $region50: #{tpu_custom_call.1} parent=1 // pred_check
      _
    $region51: #{tpu_custom_call.1} parent=1 // pred_check_branch
      %779 = sbr.rel (0) target = $region53
    $region52: #{tpu_custom_call.1} parent=1 // pred_region
      %s781 = ssub.s32 128, 128
      %782 = vsyncadd [#allocation5], %s781
      %s784 = sshll.u32 [#allocation11], 4
      %s785 = int_to_ptr.vmem [resolvable:$true] %s784
      %787 = dma.vmem_to_hbm [thread:$0]  %s785, 128, %s6, [#allocation5]
    $region53: #{tpu_custom_call.1} parent=1 // pred_fallthru
      _
    // Predicated region
    $region54: #{tpu_custom_call.1} parent=1 // pred_check
      _
    $region55: #{tpu_custom_call.1} parent=1 // pred_check_branch
      %789 = sbr.rel (0) target = $region57
    $region56: #{tpu_custom_call.1} parent=1 // pred_region
      %s791 = ssub.s32 256, 256
      %792 = vsyncadd [#allocation13], %s791
      %s794 = sshll.u32 [#allocation12], 4
      %s795 = int_to_ptr.vmem [resolvable:$true] %s794
      %797 = dma.vmem_to_hbm [thread:$0]  %s795, 256, %s7, [#allocation13]
    $region57: #{tpu_custom_call.1} parent=1 // pred_fallthru
      _
    // Predicated region
    $region58: #{tpu_custom_call.1} parent=1 // pred_check
      _
    $region59: #{tpu_custom_call.1} parent=1 // pred_check_branch
      %799 = sbr.rel (0) target = $region61
    $region60: #{tpu_custom_call.1} parent=1 // pred_region
      %800 = dma.done [#allocation5], 128
    $region61: #{tpu_custom_call.1} parent=1 // pred_fallthru
      _
    // Predicated region
    $region62: #{tpu_custom_call.1} parent=1 // pred_check
      _
    $region63: #{tpu_custom_call.1} parent=1 // pred_check_branch
      %802 = sbr.rel (0) target = $region65
    $region64: #{tpu_custom_call.1} parent=1 // pred_region
      %803 = dma.done [#allocation13], 256
    $region65: #{tpu_custom_call.1} parent=1 // pred_fallthru
      _
    %804 = vsyncpa [#allocation4], 1
    %805 = vsyncpa [#allocation7], 1
    %806 = vsyncpa [#allocation10], 1
    %807 = vsyncpa [#allocation5], 1
    %808 = vsyncpa [#allocation13], 1

// kernel: tpu_custom_call.1
$region0: #{tpu_custom_call.1}
  #allocation0 [shape = 'u32[]', space=smem, size = 0x4, offset = 0x4, fixed_abs, tag = 'smem constant byte address 0x4 - core index']
  #allocation1 [shape = 'u32[144,128]{1,0:T(1,128)}', space=vmem, size = 0x12000, scoped, tag = 'internal scratch']
  #allocation2 [shape = 'f32[8,128]{1,0:T(8,128)}', space=vmem, size = 0x1000, scoped, tag = 'scratch operand']
  %s0 = inlined_call_operand.hbm [shape: bf16[8,512], index: 0, kind: input, shape index: {}]
  %s1 = inlined_call_operand.hbm [shape: bf16[512,128], index: 1, kind: input, shape index: {}]
  %s2 = inlined_call_operand.hbm [shape: bf16[128,256], index: 2, kind: input, shape index: {}]
  %s3 = inlined_call_operand.vmem [shape: f32[1,256], index: 3, kind: input, shape index: {}]
  %s4 = inlined_call_operand.hbm [shape: bf16[256,128], index: 4, kind: input, shape index: {}]
  %s5 = inlined_call_operand.vmem [shape: f32[1,128], index: 5, kind: input, shape index: {}]
  %s6 = inlined_call_operand.hbm [shape: f32[8,128], index: 6, kind: output, shape index: {0}]
  %s7 = inlined_call_operand.hbm [shape: f32[8,256], index: 7, kind: output, shape index: {1}]
  %8 = xla_tuple %s6, %s7
  %s9 = sld [smem:[#allocation0]]
  $region66: #{tpu_custom_call.1} parent=0
    _
  %s11 = ssub.s32 1, %s9
  %s12 = scalar_select 0, %s11, %s9
  $region1: #{tpu_custom_call.1} parent=0
    #allocation3 [shape = 'u8[8192]{0}', space=vmem, size = 0x2000, scoped, tag = 'input window, operand 0, single buffered']
    #allocation4 [shape = 's32[1]{0}', space=sflag, size = 0x4, scoped, tag = 'scoped memory for tpu_custom_call.1']
    #allocation5 [shape = 's32[1]{0}', space=sflag, size = 0x4, scoped, tag = 'scoped memory for tpu_custom_call.1']
    #allocation6 [shape = 'u8[131072]{0}', space=vmem, size = 0x20000, scoped, tag = 'input window, operand 1, single buffered']
    #allocation7 [shape = 's32[1]{0}', space=sflag, size = 0x4, scoped, tag = 'scoped memory for tpu_custom_call.1']
    #allocation8 [shape = 'u8[65536]{0}', space=vmem, size = 0x10000, scoped, tag = 'input window, operand 2, single buffered']
    #allocation9 [shape = 'u8[65536]{0}', space=vmem, size = 0x10000, scoped, tag = 'input window, operand 4, single buffered']
    #allocation10 [shape = 's32[1]{0}', space=sflag, size = 0x4, scoped, tag = 'scoped memory for tpu_custom_call.1']
    #allocation11 [shape = 'u8[4096]{0}', space=vmem, size = 0x1000, scoped, tag = 'output window, operand 0, single buffered']
    #allocation12 [shape = 'u8[8192]{0}', space=vmem, size = 0x2000, scoped, tag = 'output window, operand 1, single buffered']
    #allocation13 [shape = 's32[1]{0}', space=sflag, size = 0x4, scoped, tag = 'scoped memory for tpu_custom_call.1']
    %13 = vsyncpa [#allocation4], 0
    %14 = vsyncpa [#allocation7], 0
    %15 = vsyncpa [#allocation10], 0
    %16 = vsyncpa [#allocation5], 0
    %17 = vsyncpa [#allocation13], 0
    // Predicated region
    $region2: #{tpu_custom_call.1} parent=1 // pred_check
      _
    $region3: #{tpu_custom_call.1} parent=1 // pred_check_branch
      %19 = sbr.rel (0) target = $region5
    $region4: #{tpu_custom_call.1} parent=1 // pred_region
      %s21 = ssub.s32 256, 256
      %22 = vsyncadd [#allocation4], %s21
      %s24 = sshll.u32 [#allocation3], 4
      %s25 = int_to_ptr.vmem [resolvable:$true] %s24
      %27 = dma.hbm_to_vmem [thread:$0]  %s0, 256, %s25, [#allocation4]
    $region5: #{tpu_custom_call.1} parent=1 // pred_fallthru
      _
    // Predicated region
    $region6: #{tpu_custom_call.1} parent=1 // pred_check
      _
    $region7: #{tpu_custom_call.1} parent=1 // pred_check_branch
      %29 = sbr.rel (0) target = $region9
    $region8: #{tpu_custom_call.1} parent=1 // pred_region
      %s31 = ssub.s32 4096, 4096
      %32 = vsyncadd [#allocation7], %s31
      %s33 = sshll.u32 [#allocation6], 4
      %s34 = int_to_ptr.vmem [resolvable:$true] %s33
      %39 = dma.hbm_to_vmem [thread:$0]  %s1, 4096, %s34, [#allocation7], 64, 64, 4
    $region9: #{tpu_custom_call.1} parent=1 // pred_fallthru
      _
    // Predicated region
    $region10: #{tpu_custom_call.1} parent=1 // pred_check
      _
    $region11: #{tpu_custom_call.1} parent=1 // pred_check_branch
      %41 = sbr.rel (0) target = $region13
    $region12: #{tpu_custom_call.1} parent=1 // pred_region
      %s43 = ssub.s32 2048, 2048
      %44 = vsyncadd [#allocation7], %s43
      %s45 = sshll.u32 [#allocation8], 4
      %s46 = int_to_ptr.vmem [resolvable:$true] %s45
      %51 = dma.hbm_to_vmem [thread:$0]  %s2, 2048, %s46, [#allocation7], 128, 128, 8
    $region13: #{tpu_custom_call.1} parent=1 // pred_fallthru
      _
    // Predicated region
    $region14: #{tpu_custom_call.1} parent=1 // pred_check
      _
    $region15: #{tpu_custom_call.1} parent=1 // pred_check_branch
      %53 = sbr.rel (0) target = $region17
    $region16: #{tpu_custom_call.1} parent=1 // pred_region
      _
    $region17: #{tpu_custom_call.1} parent=1 // pred_fallthru
      _
    // Predicated region
    $region18: #{tpu_custom_call.1} parent=1 // pred_check
      _
    $region19: #{tpu_custom_call.1} parent=1 // pred_check_branch
      %55 = sbr.rel (0) target = $region21
    $region20: #{tpu_custom_call.1} parent=1 // pred_region
      %s57 = ssub.s32 2048, 2048
      %58 = vsyncadd [#allocation10], %s57
      %s59 = sshll.u32 [#allocation9], 4
      %s60 = int_to_ptr.vmem [resolvable:$true] %s59
      %65 = dma.hbm_to_vmem [thread:$0]  %s4, 2048, %s60, [#allocation10], 64, 64, 4
    $region21: #{tpu_custom_call.1} parent=1 // pred_fallthru
      _
    // Predicated region
    $region22: #{tpu_custom_call.1} parent=1 // pred_check
      _
    $region23: #{tpu_custom_call.1} parent=1 // pred_check_branch
      %67 = sbr.rel (0) target = $region25
    $region24: #{tpu_custom_call.1} parent=1 // pred_region
      _
    $region25: #{tpu_custom_call.1} parent=1 // pred_fallthru
      _
    // Predicated region
    $region26: #{tpu_custom_call.1} parent=1 // pred_check
      _
    $region27: #{tpu_custom_call.1} parent=1 // pred_check_branch
      %69 = sbr.rel (0) target = $region29
    $region28: #{tpu_custom_call.1} parent=1 // pred_region
      %70 = dma.done [#allocation4], 256
    $region29: #{tpu_custom_call.1} parent=1 // pred_fallthru
      _
    // Predicated region
    $region30: #{tpu_custom_call.1} parent=1 // pred_check
      _
    $region31: #{tpu_custom_call.1} parent=1 // pred_check_branch
      %72 = sbr.rel (0) target = $region33
    $region32: #{tpu_custom_call.1} parent=1 // pred_region
      %73 = dma.done [#allocation7], 4096
    $region33: #{tpu_custom_call.1} parent=1 // pred_fallthru
      _
    // Predicated region
    $region34: #{tpu_custom_call.1} parent=1 // pred_check
      _
    $region35: #{tpu_custom_call.1} parent=1 // pred_check_branch
      %75 = sbr.rel (0) target = $region37
    $region36: #{tpu_custom_call.1} parent=1 // pred_region
      %76 = dma.done [#allocation7], 2048
    $region37: #{tpu_custom_call.1} parent=1 // pred_fallthru
      _
    // Predicated region
    $region38: #{tpu_custom_call.1} parent=1 // pred_check
      _
    $region39: #{tpu_custom_call.1} parent=1 // pred_check_branch
      %78 = sbr.rel (0) target = $region41
    $region40: #{tpu_custom_call.1} parent=1 // pred_region
      %79 = dma.done [#allocation10], 2048
    $region41: #{tpu_custom_call.1} parent=1 // pred_fallthru
      _
    %p81 = scmp.eq.s32.totalorder 0, 0
    // Predicated region
    $region42: #{tpu_custom_call.1} parent=1 // pred_check
      %p82 = pneg %p81
    $region43: #{tpu_custom_call.1} parent=1 // pred_check_branch
      %84 = sbr.rel (%p82) target = $region45
    $region44: #{tpu_custom_call.1} parent=1 // pred_region
      %85 = vst [vmem:[#allocation2] sm:$0xff] 0.0
    $region45: #{tpu_custom_call.1} parent=1 // pred_fallthru
      _
    %v86 = vld [vmem:[#allocation2] sm:$0xff]
    %v87 = vld [vmem:[#allocation3] sm:$0xff]
    %v88 = vld [vmem:[#allocation3 + $0x8] sm:$0xff]
    %v89 = vld [vmem:[#allocation6] sm:$0xf]
    %v90 = vld [vmem:[#allocation6 + $0x4] sm:$0xf]
    %v91 = vld [vmem:[#allocation6 + $0x8] sm:$0xf]
    %v92 = vld [vmem:[#allocation6 + $0xc] sm:$0xf]
    %v93 = vld [vmem:[#allocation6 + $0x10] sm:$0xf]
    %v94 = vld [vmem:[#allocation6 + $0x14] sm:$0xf]
    %v95 = vld [vmem:[#allocation6 + $0x18] sm:$0xf]
    %v96 = vld [vmem:[#allocation6 + $0x1c] sm:$0xf]
    %v97 = vld [vmem:[#allocation6 + $0x20] sm:$0xf]
    %v98 = vld [vmem:[#allocation6 + $0x24] sm:$0xf]
    %v99 = vld [vmem:[#allocation6 + $0x28] sm:$0xf]
    %v100 = vld [vmem:[#allocation6 + $0x2c] sm:$0xf]
    %v101 = vld [vmem:[#allocation6 + $0x30] sm:$0xf]
    %v102 = vld [vmem:[#allocation6 + $0x34] sm:$0xf]
    %v103 = vld [vmem:[#allocation6 + $0x38] sm:$0xf]
    %v104 = vld [vmem:[#allocation6 + $0x3c] sm:$0xf]
    %v105 = vld [vmem:[#allocation6 + $0x40] sm:$0xf]
    %v106 = vld [vmem:[#allocation6 + $0x44] sm:$0xf]
    %v107 = vld [vmem:[#allocation6 + $0x48] sm:$0xf]
    %v108 = vld [vmem:[#allocation6 + $0x4c] sm:$0xf]
    %v109 = vld [vmem:[#allocation6 + $0x50] sm:$0xf]
    %v110 = vld [vmem:[#allocation6 + $0x54] sm:$0xf]
    %v111 = vld [vmem:[#allocation6 + $0x58] sm:$0xf]
    %v112 = vld [vmem:[#allocation6 + $0x5c] sm:$0xf]
    %v113 = vld [vmem:[#allocation6 + $0x60] sm:$0xf]
    %v114 = vld [vmem:[#allocation6 + $0x64] sm:$0xf]
    %v115 = vld [vmem:[#allocation6 + $0x68] sm:$0xf]
    %v116 = vld [vmem:[#allocation6 + $0x6c] sm:$0xf]
    %v117 = vld [vmem:[#allocation6 + $0x70] sm:$0xf]
    %v118 = vld [vmem:[#allocation6 + $0x74] sm:$0xf]
    %v119 = vld [vmem:[#allocation6 + $0x78] sm:$0xf]
    %v120 = vld [vmem:[#allocation6 + $0x7c] sm:$0xf]
    %v121 = vld [vmem:[#allocation6 + $0x80] sm:$0xf]
    %v122 = vld [vmem:[#allocation6 + $0x84] sm:$0xf]
    %v123 = vld [vmem:[#allocation6 + $0x88] sm:$0xf]
    %v124 = vld [vmem:[#allocation6 + $0x8c] sm:$0xf]
    %v125 = vld [vmem:[#allocation6 + $0x90] sm:$0xf]
    %v126 = vld [vmem:[#allocation6 + $0x94] sm:$0xf]
    %v127 = vld [vmem:[#allocation6 + $0x98] sm:$0xf]
    %v128 = vld [vmem:[#allocation6 + $0x9c] sm:$0xf]
    %v129 = vld [vmem:[#allocation6 + $0xa0] sm:$0xf]
    %v130 = vld [vmem:[#allocation6 + $0xa4] sm:$0xf]
    %v131 = vld [vmem:[#allocation6 + $0xa8] sm:$0xf]
    %v132 = vld [vmem:[#allocation6 + $0xac] sm:$0xf]
    %v133 = vld [vmem:[#allocation6 + $0xb0] sm:$0xf]
    %v134 = vld [vmem:[#allocation6 + $0xb4] sm:$0xf]
    %v135 = vld [vmem:[#allocation6 + $0xb8] sm:$0xf]
    %v136 = vld [vmem:[#allocation6 + $0xbc] sm:$0xf]
    %v137 = vld [vmem:[#allocation6 + $0xc0] sm:$0xf]
    %v138 = vld [vmem:[#allocation6 + $0xc4] sm:$0xf]
    %v139 = vld [vmem:[#allocation6 + $0xc8] sm:$0xf]
    %v140 = vld [vmem:[#allocation6 + $0xcc] sm:$0xf]
    %v141 = vld [vmem:[#allocation6 + $0xd0] sm:$0xf]
    %v142 = vld [vmem:[#allocation6 + $0xd4] sm:$0xf]
    %v143 = vld [vmem:[#allocation6 + $0xd8] sm:$0xf]
    %v144 = vld [vmem:[#allocation6 + $0xdc] sm:$0xf]
    %v145 = vld [vmem:[#allocation6 + $0xe0] sm:$0xf]
    %v146 = vld [vmem:[#allocation6 + $0xe4] sm:$0xf]
    %v147 = vld [vmem:[#allocation6 + $0xe8] sm:$0xf]
    %v148 = vld [vmem:[#allocation6 + $0xec] sm:$0xf]
    %v149 = vld [vmem:[#allocation6 + $0xf0] sm:$0xf]
    %v150 = vld [vmem:[#allocation6 + $0xf4] sm:$0xf]
    %v151 = vld [vmem:[#allocation6 + $0xf8] sm:$0xf]
    %v152 = vld [vmem:[#allocation6 + $0xfc] sm:$0xf]
    %v155 = vunpack.c.l.b16 %v87
    %v156 = vunpack.c.h.b16 %v87
    %v157 = vunpack.c.l.b16 %v88
    %v158 = vunpack.c.h.b16 %v88
    %v159 = vpack.c.b16 %v155, %v155
    %v160 = vpack.c.b16 %v156, %v156
    %v161 = vpack.c.b16 %v157, %v157
    %v162 = vpack.c.b16 %v158, %v158
    %v231 = vunpack.c.l.b16 %v89
    %v232 = vunpack.c.l.b16 %v90
    %v233 = vunpack.c.l.b16 %v91
    %v234 = vunpack.c.l.b16 %v92
    %v235 = vunpack.c.l.b16 %v93
    %v236 = vunpack.c.l.b16 %v94
    %v237 = vunpack.c.l.b16 %v95
    %v238 = vunpack.c.l.b16 %v96
    %v239 = vunpack.c.l.b16 %v97
    %v240 = vunpack.c.l.b16 %v98
    %v241 = vunpack.c.l.b16 %v99
    %v242 = vunpack.c.l.b16 %v100
    %v243 = vunpack.c.l.b16 %v101
    %v244 = vunpack.c.l.b16 %v102
    %v245 = vunpack.c.l.b16 %v103
    %v246 = vunpack.c.l.b16 %v104
    %v247 = vunpack.c.l.b16 %v105
    %v248 = vunpack.c.l.b16 %v106
    %v249 = vunpack.c.l.b16 %v107
    %v250 = vunpack.c.l.b16 %v108
    %v251 = vunpack.c.l.b16 %v109
    %v252 = vunpack.c.l.b16 %v110
    %v253 = vunpack.c.l.b16 %v111
    %v254 = vunpack.c.l.b16 %v112
    %v255 = vunpack.c.l.b16 %v113
    %v256 = vunpack.c.l.b16 %v114
    %v257 = vunpack.c.l.b16 %v115
    %v258 = vunpack.c.l.b16 %v116
    %v259 = vunpack.c.l.b16 %v117
    %v260 = vunpack.c.l.b16 %v118
    %v261 = vunpack.c.l.b16 %v119
    %v262 = vunpack.c.l.b16 %v120
    %v263 = vunpack.c.l.b16 %v121
    %v264 = vunpack.c.l.b16 %v122
    %v265 = vunpack.c.l.b16 %v123
    %v266 = vunpack.c.l.b16 %v124
    %v267 = vunpack.c.l.b16 %v125
    %v268 = vunpack.c.l.b16 %v126
    %v269 = vunpack.c.l.b16 %v127
    %v270 = vunpack.c.l.b16 %v128
    %v271 = vunpack.c.l.b16 %v129
    %v272 = vunpack.c.l.b16 %v130
    %v273 = vunpack.c.l.b16 %v131
    %v274 = vunpack.c.l.b16 %v132
    %v275 = vunpack.c.l.b16 %v133
    %v276 = vunpack.c.l.b16 %v134
    %v277 = vunpack.c.l.b16 %v135
    %v278 = vunpack.c.l.b16 %v136
    %v279 = vunpack.c.l.b16 %v137
    %v280 = vunpack.c.l.b16 %v138
    %v281 = vunpack.c.l.b16 %v139
    %v282 = vunpack.c.l.b16 %v140
    %v283 = vunpack.c.l.b16 %v141
    %v284 = vunpack.c.l.b16 %v142
    %v285 = vunpack.c.l.b16 %v143
    %v286 = vunpack.c.l.b16 %v144
    %v287 = vunpack.c.l.b16 %v145
    %v288 = vunpack.c.l.b16 %v146
    %v289 = vunpack.c.l.b16 %v147
    %v290 = vunpack.c.l.b16 %v148
    %v291 = vunpack.c.l.b16 %v149
    %v292 = vunpack.c.l.b16 %v150
    %v293 = vunpack.c.l.b16 %v151
    %v294 = vunpack.c.l.b16 %v152
    %v295 = vpack.c.b16 %v232, %v231
    %v296 = vpack.c.b16 %v234, %v233
    %v297 = vpack.c.b16 %v236, %v235
    %v298 = vpack.c.b16 %v238, %v237
    %v299 = vpack.c.b16 %v240, %v239
    %v300 = vpack.c.b16 %v242, %v241
    %v301 = vpack.c.b16 %v244, %v243
    %v302 = vpack.c.b16 %v246, %v245
    %v303 = vpack.c.b16 %v248, %v247
    %v304 = vpack.c.b16 %v250, %v249
    %v305 = vpack.c.b16 %v252, %v251
    %v306 = vpack.c.b16 %v254, %v253
    %v307 = vpack.c.b16 %v256, %v255
    %v308 = vpack.c.b16 %v258, %v257
    %v309 = vpack.c.b16 %v260, %v259
    %v310 = vpack.c.b16 %v262, %v261
    %v311 = vpack.c.b16 %v264, %v263
    %v312 = vpack.c.b16 %v266, %v265
    %v313 = vpack.c.b16 %v268, %v267
    %v314 = vpack.c.b16 %v270, %v269
    %v315 = vpack.c.b16 %v272, %v271
    %v316 = vpack.c.b16 %v274, %v273
    %v317 = vpack.c.b16 %v276, %v275
    %v318 = vpack.c.b16 %v278, %v277
    %v319 = vpack.c.b16 %v280, %v279
    %v320 = vpack.c.b16 %v282, %v281
    %v321 = vpack.c.b16 %v284, %v283
    %v322 = vpack.c.b16 %v286, %v285
    %v323 = vpack.c.b16 %v288, %v287
    %v324 = vpack.c.b16 %v290, %v289
    %v325 = vpack.c.b16 %v292, %v291
    %v326 = vpack.c.b16 %v294, %v293
    %359 = vmatprep.subr.bf16.mxu0 0
    %360 = vmatpush1.bf16.msra.mxu0 %v295
    %361 = vmatprep.subr.bf16.mxu0 0
    %362 = vmatpush1.bf16.msra.mxu0 %v296
    %363 = vmatprep.subr.bf16.mxu0 0
    %364 = vmatpush1.bf16.msra.mxu0 %v297
    %365 = vmatprep.subr.bf16.mxu0 0
    %366 = vmatpush1.bf16.msra.mxu0 %v298
    %367 = vmatprep.subr.bf16.mxu0 0
    %368 = vmatpush1.bf16.msra.mxu0 %v299
    %369 = vmatprep.subr.bf16.mxu0 0
    %370 = vmatpush1.bf16.msra.mxu0 %v300
    %371 = vmatprep.subr.bf16.mxu0 0
    %372 = vmatpush1.bf16.msra.mxu0 %v301
    %373 = vmatprep.subr.bf16.mxu0 0
    %374 = vmatpush1.bf16.msra.mxu0 %v302
    %375 = vmatprep.subr.bf16.mxu0 0
    %376 = vmatpush1.bf16.msra.mxu0 %v303
    %377 = vmatprep.subr.bf16.mxu0 0
    %378 = vmatpush1.bf16.msra.mxu0 %v304
    %379 = vmatprep.subr.bf16.mxu0 0
    %380 = vmatpush1.bf16.msra.mxu0 %v305
    %381 = vmatprep.subr.bf16.mxu0 0
    %382 = vmatpush1.bf16.msra.mxu0 %v306
    %383 = vmatprep.subr.bf16.mxu0 0
    %384 = vmatpush1.bf16.msra.mxu0 %v307
    %385 = vmatprep.subr.bf16.mxu0 0
    %386 = vmatpush1.bf16.msra.mxu0 %v308
    %387 = vmatprep.subr.bf16.mxu0 0
    %388 = vmatpush1.bf16.msra.mxu0 %v309
    %389 = vmatprep.subr.bf16.mxu0 0
    %390 = vmatpush1.bf16.msra.mxu0 %v310
    %391 = vmatprep.mubr.bf16.mxu0 %v160
    %392 = vmatmul.mubr.bf16.gmra.mrb[0].mxu0 %v159
    %v393 = vpop.f32.mrb[0].mxu0
    %v394 = vadd.f32 0.0, %v393
    %v395 = vpop.f32.mrb[0].mxu0
    %v396 = vpop.f32.mrb[0].mxu0
    %v397 = vpop.f32.mrb[0].mxu0
    %398 = vdwg.mxu0
    %399 = vmatprep.subr.bf16.mxu0 0
    %400 = vmatpush1.bf16.msra.mxu0 %v311
    %401 = vmatprep.subr.bf16.mxu0 0
    %402 = vmatpush1.bf16.msra.mxu0 %v312
    %403 = vmatprep.subr.bf16.mxu0 0
    %404 = vmatpush1.bf16.msra.mxu0 %v313
    %405 = vmatprep.subr.bf16.mxu0 0
    %406 = vmatpush1.bf16.msra.mxu0 %v314
    %407 = vmatprep.subr.bf16.mxu0 0
    %408 = vmatpush1.bf16.msra.mxu0 %v315
    %409 = vmatprep.subr.bf16.mxu0 0
    %410 = vmatpush1.bf16.msra.mxu0 %v316
    %411 = vmatprep.subr.bf16.mxu0 0
    %412 = vmatpush1.bf16.msra.mxu0 %v317
    %413 = vmatprep.subr.bf16.mxu0 0
    %414 = vmatpush1.bf16.msra.mxu0 %v318
    %415 = vmatprep.subr.bf16.mxu0 0
    %416 = vmatpush1.bf16.msra.mxu0 %v319
    %417 = vmatprep.subr.bf16.mxu0 0
    %418 = vmatpush1.bf16.msra.mxu0 %v320
    %419 = vmatprep.subr.bf16.mxu0 0
    %420 = vmatpush1.bf16.msra.mxu0 %v321
    %421 = vmatprep.subr.bf16.mxu0 0
    %422 = vmatpush1.bf16.msra.mxu0 %v322
    %423 = vmatprep.subr.bf16.mxu0 0
    %424 = vmatpush1.bf16.msra.mxu0 %v323
    %425 = vmatprep.subr.bf16.mxu0 0
    %426 = vmatpush1.bf16.msra.mxu0 %v324
    %427 = vmatprep.subr.bf16.mxu0 0
    %428 = vmatpush1.bf16.msra.mxu0 %v325
    %429 = vmatprep.subr.bf16.mxu0 0
    %430 = vmatpush1.bf16.msra.mxu0 %v326
    %431 = vmatprep.mubr.bf16.mxu0 %v162
    %432 = vmatmul.mubr.bf16.gmra.mrb[0].mxu0 %v161
    %v433 = vpop.f32.mrb[0].mxu0
    %v434 = vadd.f32 %v394, %v433
    %v435 = vpop.f32.mrb[0].mxu0
    %v436 = vpop.f32.mrb[0].mxu0
    %v437 = vpop.f32.mrb[0].mxu0
    %438 = vdwg.mxu0
    %v439 = vadd.f32 %v86, %v434
    %440 = vst [vmem:[#allocation2] sm:$0xff] %v439
    // Predicated region
    $region46: #{tpu_custom_call.1} parent=1 // pred_check
      %p441 = pneg %p81
    $region47: #{tpu_custom_call.1} parent=1 // pred_check_branch
      %443 = sbr.rel (%p441) target = $region49
    $region48: #{tpu_custom_call.1} parent=1 // pred_region
      %v444 = vld [vmem:[#allocation2] sm:$0xff]
      %v445 = vmul.f32 %v444, 0.0625
      %v446 = vpack.c.bf16 %v445, %v445
      %v447 = vld [vmem:[#allocation8] sm:$0xff]
      %v448 = vld [vmem:[#allocation8 + $0x8] sm:$0xff]
      %v449 = vld [vmem:[#allocation8 + $0x10] sm:$0xff]
      %v450 = vld [vmem:[#allocation8 + $0x18] sm:$0xff]
      %v451 = vld [vmem:[#allocation8 + $0x20] sm:$0xff]
      %v452 = vld [vmem:[#allocation8 + $0x28] sm:$0xff]
      %v453 = vld [vmem:[#allocation8 + $0x30] sm:$0xff]
      %v454 = vld [vmem:[#allocation8 + $0x38] sm:$0xff]
      %v455 = vld [vmem:[#allocation8 + $0x40] sm:$0xff]
      %v456 = vld [vmem:[#allocation8 + $0x48] sm:$0xff]
      %v457 = vld [vmem:[#allocation8 + $0x50] sm:$0xff]
      %v458 = vld [vmem:[#allocation8 + $0x58] sm:$0xff]
      %v459 = vld [vmem:[#allocation8 + $0x60] sm:$0xff]
      %v460 = vld [vmem:[#allocation8 + $0x68] sm:$0xff]
      %v461 = vld [vmem:[#allocation8 + $0x70] sm:$0xff]
      %v462 = vld [vmem:[#allocation8 + $0x78] sm:$0xff]
      %v463 = vld [vmem:[%s3] sm:$0x3]
      %v465 = vlaneseq
      %v466 = vshrl.u32 %v465, 7
      %v467 = vsub.s32 0, %v466
      %v468 = vrot.slane %v463, %v467
      %v469 = vlaneseq
      %v470 = vshrl.u32 %v469, 7
      %v471 = vsub.s32 1, %v470
      %v472 = vrot.slane %v463, %v471
      %v491 = vunpack.c.l.b16 %v447
      %v492 = vunpack.c.h.b16 %v447
      %v493 = vunpack.c.l.b16 %v448
      %v494 = vunpack.c.h.b16 %v448
      %v495 = vunpack.c.l.b16 %v449
      %v496 = vunpack.c.h.b16 %v449
      %v497 = vunpack.c.l.b16 %v450
      %v498 = vunpack.c.h.b16 %v450
      %v499 = vunpack.c.l.b16 %v451
      %v500 = vunpack.c.h.b16 %v451
      %v501 = vunpack.c.l.b16 %v452
      %v502 = vunpack.c.h.b16 %v452
      %v503 = vunpack.c.l.b16 %v453
      %v504 = vunpack.c.h.b16 %v453
      %v505 = vunpack.c.l.b16 %v454
      %v506 = vunpack.c.h.b16 %v454
      %v507 = vunpack.c.l.b16 %v455
      %v508 = vunpack.c.h.b16 %v455
      %v509 = vunpack.c.l.b16 %v456
      %v510 = vunpack.c.h.b16 %v456
      %v511 = vunpack.c.l.b16 %v457
      %v512 = vunpack.c.h.b16 %v457
      %v513 = vunpack.c.l.b16 %v458
      %v514 = vunpack.c.h.b16 %v458
      %v515 = vunpack.c.l.b16 %v459
      %v516 = vunpack.c.h.b16 %v459
      %v517 = vunpack.c.l.b16 %v460
      %v518 = vunpack.c.h.b16 %v460
      %v519 = vunpack.c.l.b16 %v461
      %v520 = vunpack.c.h.b16 %v461
      %v521 = vunpack.c.l.b16 %v462
      %v522 = vunpack.c.h.b16 %v462
      %v523 = vpack.c.b16 %v493, %v491
      %v524 = vpack.c.b16 %v494, %v492
      %v525 = vpack.c.b16 %v497, %v495
      %v526 = vpack.c.b16 %v498, %v496
      %v527 = vpack.c.b16 %v501, %v499
      %v528 = vpack.c.b16 %v502, %v500
      %v529 = vpack.c.b16 %v505, %v503
      %v530 = vpack.c.b16 %v506, %v504
      %v531 = vpack.c.b16 %v509, %v507
      %v532 = vpack.c.b16 %v510, %v508
      %v533 = vpack.c.b16 %v513, %v511
      %v534 = vpack.c.b16 %v514, %v512
      %v535 = vpack.c.b16 %v517, %v515
      %v536 = vpack.c.b16 %v518, %v516
      %v537 = vpack.c.b16 %v521, %v519
      %v538 = vpack.c.b16 %v522, %v520
      %555 = vmatprep.subr.bf16.mxu0 %v524
      %556 = vmatpush1.bf16.msra.mxu0 %v523
      %557 = vmatprep.subr.bf16.mxu0 %v526
      %558 = vmatpush1.bf16.msra.mxu0 %v525
      %559 = vmatprep.subr.bf16.mxu0 %v528
      %560 = vmatpush1.bf16.msra.mxu0 %v527
      %561 = vmatprep.subr.bf16.mxu0 %v530
      %562 = vmatpush1.bf16.msra.mxu0 %v529
      %563 = vmatprep.subr.bf16.mxu0 %v532
      %564 = vmatpush1.bf16.msra.mxu0 %v531
      %565 = vmatprep.subr.bf16.mxu0 %v534
      %566 = vmatpush1.bf16.msra.mxu0 %v533
      %567 = vmatprep.subr.bf16.mxu0 %v536
      %568 = vmatpush1.bf16.msra.mxu0 %v535
      %569 = vmatprep.subr.bf16.mxu0 %v538
      %570 = vmatpush1.bf16.msra.mxu0 %v537
      %571 = vmatprep.subr.bf16.mxu0 0
      %572 = vmatpush1.bf16.msra.mxu0 0
      %573 = vmatprep.subr.bf16.mxu0 0
      %574 = vmatpush1.bf16.msra.mxu0 0
      %575 = vmatprep.subr.bf16.mxu0 0
      %576 = vmatpush1.bf16.msra.mxu0 0
      %577 = vmatprep.subr.bf16.mxu0 0
      %578 = vmatpush1.bf16.msra.mxu0 0
      %579 = vmatprep.subr.bf16.mxu0 0
      %580 = vmatpush1.bf16.msra.mxu0 0
      %581 = vmatprep.subr.bf16.mxu0 0
      %582 = vmatpush1.bf16.msra.mxu0 0
      %583 = vmatprep.subr.bf16.mxu0 0
      %584 = vmatpush1.bf16.msra.mxu0 0
      %585 = vmatprep.subr.bf16.mxu0 0
      %586 = vmatpush1.bf16.msra.mxu0 0
      %587 = vmatprep.mubr.bf16.mxu0 0
      %588 = vmatmul.mubr.bf16.gmra.mrb[0].mxu0 %v446
      %v589 = vpop.f32.mrb[0].mxu0
      %v590 = vadd.f32 %v468, %v589
      %v591 = vpop.f32.mrb[0].mxu0
      %v592 = vadd.f32 %v472, %v591
      %v593 = vpop.f32.mrb[0].mxu0
      %v594 = vpop.f32.mrb[0].mxu0
      %595 = vdwg.mxu0
      %v596 = vmax.f32 %v590, 0.0
      %v597 = vmax.f32 %v592, 0.0
      %v598 = vpack.c.bf16 %v596, %v596
      %v599 = vpack.c.bf16 %v597, %v597
      %v600 = vld [vmem:[#allocation9] sm:$0xf]
      %v601 = vld [vmem:[#allocation9 + $0x4] sm:$0xf]
      %v602 = vld [vmem:[#allocation9 + $0x8] sm:$0xf]
      %v603 = vld [vmem:[#allocation9 + $0xc] sm:$0xf]
      %v604 = vld [vmem:[#allocation9 + $0x10] sm:$0xf]
      %v605 = vld [vmem:[#allocation9 + $0x14] sm:$0xf]
      %v606 = vld [vmem:[#allocation9 + $0x18] sm:$0xf]
      %v607 = vld [vmem:[#allocation9 + $0x1c] sm:$0xf]
      %v608 = vld [vmem:[#allocation9 + $0x20] sm:$0xf]
      %v609 = vld [vmem:[#allocation9 + $0x24] sm:$0xf]
      %v610 = vld [vmem:[#allocation9 + $0x28] sm:$0xf]
      %v611 = vld [vmem:[#allocation9 + $0x2c] sm:$0xf]
      %v612 = vld [vmem:[#allocation9 + $0x30] sm:$0xf]
      %v613 = vld [vmem:[#allocation9 + $0x34] sm:$0xf]
      %v614 = vld [vmem:[#allocation9 + $0x38] sm:$0xf]
      %v615 = vld [vmem:[#allocation9 + $0x3c] sm:$0xf]
      %v616 = vld [vmem:[#allocation9 + $0x40] sm:$0xf]
      %v617 = vld [vmem:[#allocation9 + $0x44] sm:$0xf]
      %v618 = vld [vmem:[#allocation9 + $0x48] sm:$0xf]
      %v619 = vld [vmem:[#allocation9 + $0x4c] sm:$0xf]
      %v620 = vld [vmem:[#allocation9 + $0x50] sm:$0xf]
      %v621 = vld [vmem:[#allocation9 + $0x54] sm:$0xf]
      %v622 = vld [vmem:[#allocation9 + $0x58] sm:$0xf]
      %v623 = vld [vmem:[#allocation9 + $0x5c] sm:$0xf]
      %v624 = vld [vmem:[#allocation9 + $0x60] sm:$0xf]
      %v625 = vld [vmem:[#allocation9 + $0x64] sm:$0xf]
      %v626 = vld [vmem:[#allocation9 + $0x68] sm:$0xf]
      %v627 = vld [vmem:[#allocation9 + $0x6c] sm:$0xf]
      %v628 = vld [vmem:[#allocation9 + $0x70] sm:$0xf]
      %v629 = vld [vmem:[#allocation9 + $0x74] sm:$0xf]
      %v630 = vld [vmem:[#allocation9 + $0x78] sm:$0xf]
      %v631 = vld [vmem:[#allocation9 + $0x7c] sm:$0xf]
      %v632 = vld [vmem:[%s5] sm:$0x1]
      %v634 = vlaneseq
      %v635 = vshrl.u32 %v634, 7
      %v636 = vsub.s32 0, %v635
      %v637 = vrot.slane %v632, %v636
      %v671 = vunpack.c.l.b16 %v600
      %v672 = vunpack.c.l.b16 %v601
      %v673 = vunpack.c.l.b16 %v602
      %v674 = vunpack.c.l.b16 %v603
      %v675 = vunpack.c.l.b16 %v604
      %v676 = vunpack.c.l.b16 %v605
      %v677 = vunpack.c.l.b16 %v606
      %v678 = vunpack.c.l.b16 %v607
      %v679 = vunpack.c.l.b16 %v608
      %v680 = vunpack.c.l.b16 %v609
      %v681 = vunpack.c.l.b16 %v610
      %v682 = vunpack.c.l.b16 %v611
      %v683 = vunpack.c.l.b16 %v612
      %v684 = vunpack.c.l.b16 %v613
      %v685 = vunpack.c.l.b16 %v614
      %v686 = vunpack.c.l.b16 %v615
      %v687 = vunpack.c.l.b16 %v616
      %v688 = vunpack.c.l.b16 %v617
      %v689 = vunpack.c.l.b16 %v618
      %v690 = vunpack.c.l.b16 %v619
      %v691 = vunpack.c.l.b16 %v620
      %v692 = vunpack.c.l.b16 %v621
      %v693 = vunpack.c.l.b16 %v622
      %v694 = vunpack.c.l.b16 %v623
      %v695 = vunpack.c.l.b16 %v624
      %v696 = vunpack.c.l.b16 %v625
      %v697 = vunpack.c.l.b16 %v626
      %v698 = vunpack.c.l.b16 %v627
      %v699 = vunpack.c.l.b16 %v628
      %v700 = vunpack.c.l.b16 %v629
      %v701 = vunpack.c.l.b16 %v630
      %v702 = vunpack.c.l.b16 %v631
      %v703 = vpack.c.b16 %v672, %v671
      %v704 = vpack.c.b16 %v674, %v673
      %v705 = vpack.c.b16 %v676, %v675
      %v706 = vpack.c.b16 %v678, %v677
      %v707 = vpack.c.b16 %v680, %v679
      %v708 = vpack.c.b16 %v682, %v681
      %v709 = vpack.c.b16 %v684, %v683
      %v710 = vpack.c.b16 %v686, %v685
      %v711 = vpack.c.b16 %v688, %v687
      %v712 = vpack.c.b16 %v690, %v689
      %v713 = vpack.c.b16 %v692, %v691
      %v714 = vpack.c.b16 %v694, %v693
      %v715 = vpack.c.b16 %v696, %v695
      %v716 = vpack.c.b16 %v698, %v697
      %v717 = vpack.c.b16 %v700, %v699
      %v718 = vpack.c.b16 %v702, %v701
      %735 = vmatprep.subr.bf16.mxu0 0
      %736 = vmatpush1.bf16.msra.mxu0 %v703
      %737 = vmatprep.subr.bf16.mxu0 0
      %738 = vmatpush1.bf16.msra.mxu0 %v704
      %739 = vmatprep.subr.bf16.mxu0 0
      %740 = vmatpush1.bf16.msra.mxu0 %v705
      %741 = vmatprep.subr.bf16.mxu0 0
      %742 = vmatpush1.bf16.msra.mxu0 %v706
      %743 = vmatprep.subr.bf16.mxu0 0
      %744 = vmatpush1.bf16.msra.mxu0 %v707
      %745 = vmatprep.subr.bf16.mxu0 0
      %746 = vmatpush1.bf16.msra.mxu0 %v708
      %747 = vmatprep.subr.bf16.mxu0 0
      %748 = vmatpush1.bf16.msra.mxu0 %v709
      %749 = vmatprep.subr.bf16.mxu0 0
      %750 = vmatpush1.bf16.msra.mxu0 %v710
      %751 = vmatprep.subr.bf16.mxu0 0
      %752 = vmatpush1.bf16.msra.mxu0 %v711
      %753 = vmatprep.subr.bf16.mxu0 0
      %754 = vmatpush1.bf16.msra.mxu0 %v712
      %755 = vmatprep.subr.bf16.mxu0 0
      %756 = vmatpush1.bf16.msra.mxu0 %v713
      %757 = vmatprep.subr.bf16.mxu0 0
      %758 = vmatpush1.bf16.msra.mxu0 %v714
      %759 = vmatprep.subr.bf16.mxu0 0
      %760 = vmatpush1.bf16.msra.mxu0 %v715
      %761 = vmatprep.subr.bf16.mxu0 0
      %762 = vmatpush1.bf16.msra.mxu0 %v716
      %763 = vmatprep.subr.bf16.mxu0 0
      %764 = vmatpush1.bf16.msra.mxu0 %v717
      %765 = vmatprep.subr.bf16.mxu0 0
      %766 = vmatpush1.bf16.msra.mxu0 %v718
      %767 = vmatprep.mubr.bf16.mxu0 %v599
      %768 = vmatmul.mubr.bf16.gmra.mrb[0].mxu0 %v598
      %v769 = vpop.f32.mrb[0].mxu0
      %v770 = vadd.f32 %v637, %v769
      %v771 = vpop.f32.mrb[0].mxu0
      %v772 = vpop.f32.mrb[0].mxu0
      %v773 = vpop.f32.mrb[0].mxu0
      %774 = vdwg.mxu0
      %775 = vst [vmem:[#allocation11] sm:$0xff] %v770
      %776 = vst [vmem:[#allocation12] sm:$0xff] %v596
      %777 = vst [vmem:[#allocation12 + $0x8] sm:$0xff] %v597
    $region49: #{tpu_custom_call.1} parent=1 // pred_fallthru
      _
    // Predicated region
    $region50: #{tpu_custom_call.1} parent=1 // pred_check
      _
    $region51: #{tpu_custom_call.1} parent=1 // pred_check_branch
      %779 = sbr.rel (0) target = $region53
    $region52: #{tpu_custom_call.1} parent=1 // pred_region
      %s781 = ssub.s32 128, 128
      %782 = vsyncadd [#allocation5], %s781
      %s784 = sshll.u32 [#allocation11], 4
      %s785 = int_to_ptr.vmem [resolvable:$true] %s784
      %787 = dma.vmem_to_hbm [thread:$0]  %s785, 128, %s6, [#allocation5]
    $region53: #{tpu_custom_call.1} parent=1 // pred_fallthru
      _
    // Predicated region
    $region54: #{tpu_custom_call.1} parent=1 // pred_check
      _
    $region55: #{tpu_custom_call.1} parent=1 // pred_check_branch
      %789 = sbr.rel (0) target = $region57
    $region56: #{tpu_custom_call.1} parent=1 // pred_region
      %s791 = ssub.s32 256, 256
      %792 = vsyncadd [#allocation13], %s791
      %s794 = sshll.u32 [#allocation12], 4
      %s795 = int_to_ptr.vmem [resolvable:$true] %s794
      %797 = dma.vmem_to_hbm [thread:$0]  %s795, 256, %s7, [#allocation13]
    $region57: #{tpu_custom_call.1} parent=1 // pred_fallthru
      _
    // Predicated region
    $region58: #{tpu_custom_call.1} parent=1 // pred_check
      _
    $region59: #{tpu_custom_call.1} parent=1 // pred_check_branch
      %799 = sbr.rel (0) target = $region61
    $region60: #{tpu_custom_call.1} parent=1 // pred_region
      %800 = dma.done [#allocation5], 128
    $region61: #{tpu_custom_call.1} parent=1 // pred_fallthru
      _
    // Predicated region
    $region62: #{tpu_custom_call.1} parent=1 // pred_check
      _
    $region63: #{tpu_custom_call.1} parent=1 // pred_check_branch
      %802 = sbr.rel (0) target = $region65
    $region64: #{tpu_custom_call.1} parent=1 // pred_region
      %803 = dma.done [#allocation13], 256
    $region65: #{tpu_custom_call.1} parent=1 // pred_fallthru
      _
    %804 = vsyncpa [#allocation4], 1
    %805 = vsyncpa [#allocation7], 1
    %806 = vsyncpa [#allocation10], 1
    %807 = vsyncpa [#allocation5], 1
    %808 = vsyncpa [#allocation13], 1

</llo_original>
